<compile_context>
chip_gen: v7x
topology: tpu7x:2x2x1
jax: 0.10.0
libtpu: 0.0.40
codegen_flags: <defaults>
</compile_context>

<pallas_src>
import math

import jax
import jax.numpy as jnp
from jax.experimental import pallas as pl
from jax.experimental.pallas import tpu as pltpu

LN_EPS = 1e-5  # nn.LayerNorm default eps


def word_level_kernel(e_ref, g_em_ref, b_em_ref, w1_ref, b1_ref,
                      g_gru_ref, b_gru_ref, wl_ref, bl_ref, wcw_ref, out_ref):
    Bb, L, D = e_ref.shape
    H2 = out_ref.shape[-1]

    # Batch-major rows: row r = b*L + l.  Each sentence owns L consecutive
    # sublanes (L % 8 == 0), so later (Bb, L, .) reshapes are tile-aligned.
    # sqrt(D) scale is pre-folded into the embedding table in the wrapper.
    x = e_ref[...].reshape(Bb * L, D)

    # em_layer_norm over words_dim
    mu = jnp.mean(x, axis=-1, keepdims=True)
    var = jnp.mean(jnp.square(x - mu), axis=-1, keepdims=True)
    xn = (x - mu) * jax.lax.rsqrt(var + LN_EPS)
    xn = xn * g_em_ref[...] + b_em_ref[...]
    # dropout: identity (eval mode)
    # TODO(synk): training-mode stochastic dropout not implemented (eval semantics).

    # CNN(k=1) concat + reduce_layer folded into ONE affine D -> 2H:
    #   h = xn @ (wcat @ wr) + (bcat @ wr + br)
    h = jnp.dot(xn, w1_ref[...], preferred_element_type=jnp.float32) + b1_ref[...]

    # gru_norm: LayerNorm over 2H
    mu2 = jnp.mean(h, axis=-1, keepdims=True)
    var2 = jnp.mean(jnp.square(h - mu2), axis=-1, keepdims=True)
    hn = (h - mu2) * jax.lax.rsqrt(var2 + LN_EPS)
    hn = hn * g_gru_ref[...] + b_gru_ref[...]

    # u = tanh(linear(hn));  scores = u @ word_context_weights
    u = jnp.tanh(jnp.dot(hn, wl_ref[...], preferred_element_type=jnp.float32)
                 + bl_ref[...])
    s = jnp.sum(u * wcw_ref[...], axis=-1, keepdims=True)          # (Bb*L, 1)

    # Softmax over the sequence (per sentence).  Sublane-aligned split (L % 8 == 0),
    # denominator reciprocal on the otherwise-idle EUP slot (~2^-12 rel. error).
    s3 = s.reshape(Bb, L, 1)
    m = jnp.max(s3, axis=1, keepdims=True)                          # (Bb, 1, 1)
    p = jnp.exp(s3 - m)                                             # (Bb, L, 1)
    attn = p * pl.reciprocal(jnp.sum(p, axis=1, keepdims=True), approx=True)

    # Attention-weighted sum of hn over the sequence -> (Bb, 2H)
    hn3 = hn.reshape(Bb, L, H2)
    out_ref[...] = jnp.sum(hn3 * attn, axis=1)


def init_params(key, words_num, words_dim, word_num_hidden):
    """Deterministic synthetic parameters in the original (unfused) module layout."""
    D = words_dim
    H2 = 2 * word_num_hidden
    ks = jax.random.split(key, 12)
    uni = lambda k, shape, a: jax.random.uniform(k, shape, jnp.float32, -a, a)

    embed = uni(ks[0], (words_num, D), 0.25)               # rand_embed_init (V, D)
    g_em = jnp.ones((1, D), jnp.float32)                   # em_layer_norm.weight
    b_em = jnp.zeros((1, D), jnp.float32)                  # em_layer_norm.bias
    # three Conv1d(D, 2H, kernel_size=1): torch weight (2H, D, 1), bias (2H,)
    wconv = [uni(ks[1 + i], (H2, D), 0.1) for i in range(3)]
    bconv = [uni(ks[4 + i], (H2,), 0.1) for i in range(3)]
    wcat = jnp.concatenate(wconv, axis=0).T                # (D, 6H)
    bcat = jnp.concatenate(bconv, axis=0)[None, :]         # (1, 6H)
    wr = uni(ks[7], (H2, 3 * H2), 0.1).T                   # reduce_layer.weight^T (6H, 2H)
    br = uni(ks[8], (H2,), 0.1)[None, :]                   # reduce_layer.bias
    g_gru = jnp.ones((1, H2), jnp.float32)                 # gru_norm.weight
    b_gru = jnp.zeros((1, H2), jnp.float32)                # gru_norm.bias
    wl = uni(ks[9], (H2, H2), 0.1).T                       # linear.weight^T (2H, 2H)
    bl = uni(ks[10], (H2,), 0.1)[None, :]                  # linear.bias
    wcw = uni(ks[11], (H2, 1), 0.25).T                     # word_context_weights^T (1, 2H)

    return dict(embed=embed, g_em=g_em, b_em=b_em, wcat=wcat, bcat=bcat,
                wr=wr, br=br, g_gru=g_gru, b_gru=b_gru, wl=wl, bl=bl, wcw=wcw)


def fold_params(params):
    """Fold sqrt(D) into the embedding table and the two affines into one."""
    D = params["embed"].shape[1]
    w1 = params["wcat"] @ params["wr"]                     # (D, 2H)
    b1 = params["bcat"] @ params["wr"] + params["br"]      # (1, 2H)
    return dict(embed_scaled=params["embed"] * math.sqrt(D),
                g_em=params["g_em"], b_em=params["b_em"], w1=w1, b1=b1,
                g_gru=params["g_gru"], b_gru=params["b_gru"],
                wl=params["wl"], bl=params["bl"], wcw=params["wcw"])


def word_level_rnn_forward(x_idx, params, *, block_b=8):
    """x_idx: int32 token indices of shape (L, B).  Returns ((1, B, 2H), None)."""
    folded = fold_params(params)
    L, B = x_idx.shape
    D = folded["embed_scaled"].shape[1]
    H2 = folded["wl"].shape[0]

    bb = block_b                       # batch columns per grid step (multiple of 8)
    pad = (-B) % bb
    idx_bm = x_idx.T                   # (B, L) batch-major
    if pad:
        idx_bm = jnp.concatenate(
            [idx_bm, jnp.zeros((pad, L), x_idx.dtype)], axis=0)
    Bp = B + pad

    # Embedding gather stays in XLA glue (table already carries the sqrt(D) scale).
    # TODO(synk): in-kernel gather from a VMEM-resident table with scalar-prefetched
    # ids would remove this HBM roundtrip once sentence counts get large.
    e = jnp.take(folded["embed_scaled"], idx_bm, axis=0)   # (Bp, L, D) f32

    weights = (folded["g_em"], folded["b_em"], folded["w1"], folded["b1"],
               folded["g_gru"], folded["b_gru"], folded["wl"], folded["bl"],
               folded["wcw"])

    grid = (Bp // bb,)
    in_specs = [pl.BlockSpec((bb, L, D), lambda g: (g, 0, 0))]
    # Parameters: full-array blocks, same block index every step -> stay resident.
    in_specs += [pl.BlockSpec(w.shape, lambda g, n=w.ndim: (0,) * n)
                 for w in weights]
    out_spec = pl.BlockSpec((bb, H2), lambda g: (g, 0))

    rows = Bp * L
    cost = pl.CostEstimate(
        flops=2 * rows * (D * H2 + H2 * H2),
        transcendentals=rows * (H2 + 2),
        bytes_accessed=4 * (e.size + sum(w.size for w in weights) + Bp * H2),
    )

    out = pl.pallas_call(
        word_level_kernel,
        out_shape=jax.ShapeDtypeStruct((Bp, H2), jnp.float32),
        grid=grid,
        in_specs=in_specs,
        out_specs=out_spec,
        compiler_params=pltpu.CompilerParams(
            dimension_semantics=("parallel",)),   # v7x: both TCs get work
        cost_estimate=cost,
    )(e, *weights)

    return out[None, :B, :], None


def reference_forward(x_idx, params):
    """Pure-JAX reference with the original (unfused) module structure."""
    e = jnp.take(params["embed"], x_idx, axis=0)            # (L, B, D)
    L, B, D = e.shape
    x = e * math.sqrt(D)
    mu = x.mean(-1, keepdims=True)
    xn = (x - mu) / jnp.sqrt(((x - mu) ** 2).mean(-1, keepdims=True) + LN_EPS)
    xn = xn * params["g_em"][0] + params["b_em"][0]
    c = xn @ params["wcat"] + params["bcat"][0]
    h = c @ params["wr"] + params["br"][0]
    mu2 = h.mean(-1, keepdims=True)
    hn = (h - mu2) / jnp.sqrt(((h - mu2) ** 2).mean(-1, keepdims=True) + LN_EPS)
    hn = hn * params["g_gru"][0] + params["b_gru"][0]
    u = jnp.tanh(hn @ params["wl"] + params["bl"][0])
    s = (u * params["wcw"][0]).sum(-1)                       # (L, B)
    attn = jax.nn.softmax(s, axis=0)                         # softmax over seq
    out = (hn * attn[:, :, None]).sum(0)                     # (B, 2H)
    return out[None]


if __name__ == "__main__":
    L, B = 16, 16           # seq_len, batch  (L multiple of 8; B = 2 blocks of 8)
    V, D, H = 100, 32, 16   # words_num, words_dim, word_num_hidden (2H = 32)

    key = jax.random.PRNGKey(0)
    k_idx, k_par = jax.random.split(key)
    x_idx = jax.random.randint(k_idx, (L, B), 0, V, dtype=jnp.int32)
    params = init_params(k_par, V, D, H)

    out, _ = word_level_rnn_forward(x_idx, params, block_b=8)
    out = jax.block_until_ready(out)

    assert out.shape == (1, B, 2 * H), out.shape
    ref = reference_forward(x_idx, params)
    err = float(jnp.max(jnp.abs(out - ref)))
    # Tolerance covers the EUP approx reciprocal in the softmax (~2^-12 relative,
    # a common per-sentence factor) plus the re-associated folded affine; both are
    # orders of magnitude below any real bug.
    assert jnp.allclose(out, ref, atol=2e-3, rtol=2e-3), err
    print("KERNEL_OK")
</pallas_src>

<mosaic_0001>
module attributes {stable_mosaic.version = 11 : i64} {
  func.func @word_level_kernel(%arg0: i32, %arg1: memref<8x16x32xf32, #tpu.memory_space<vmem>>, %arg2: memref<1x32xf32, #tpu.memory_space<vmem>>, %arg3: memref<1x32xf32, #tpu.memory_space<vmem>>, %arg4: memref<32x32xf32, #tpu.memory_space<vmem>>, %arg5: memref<1x32xf32, #tpu.memory_space<vmem>>, %arg6: memref<1x32xf32, #tpu.memory_space<vmem>>, %arg7: memref<1x32xf32, #tpu.memory_space<vmem>>, %arg8: memref<32x32xf32, #tpu.memory_space<vmem>>, %arg9: memref<1x32xf32, #tpu.memory_space<vmem>>, %arg10: memref<1x32xf32, #tpu.memory_space<vmem>>, %arg11: memref<8x32xf32, #tpu.memory_space<vmem>>) attributes {dimension_semantics = [#tpu.dimension_semantics<parallel>], iteration_bounds = array<i64: 2>, scalar_prefetch = 0 : i64, scratch_operands = 0 : i64, tpu.core_type = #tpu.core_type<tc>, window_params = [{transform_indices = @transform_0, window_bounds = array<i64: 8, 16, 32>}, {pipeline_mode = #tpu.pipeline_mode<synchronous>, transform_indices = @transform_1, window_bounds = array<i64: 1, 32>}, {pipeline_mode = #tpu.pipeline_mode<synchronous>, transform_indices = @transform_2, window_bounds = array<i64: 1, 32>}, {pipeline_mode = #tpu.pipeline_mode<synchronous>, transform_indices = @transform_3, window_bounds = array<i64: 32, 32>}, {pipeline_mode = #tpu.pipeline_mode<synchronous>, transform_indices = @transform_4, window_bounds = array<i64: 1, 32>}, {pipeline_mode = #tpu.pipeline_mode<synchronous>, transform_indices = @transform_5, window_bounds = array<i64: 1, 32>}, {pipeline_mode = #tpu.pipeline_mode<synchronous>, transform_indices = @transform_6, window_bounds = array<i64: 1, 32>}, {pipeline_mode = #tpu.pipeline_mode<synchronous>, transform_indices = @transform_7, window_bounds = array<i64: 32, 32>}, {pipeline_mode = #tpu.pipeline_mode<synchronous>, transform_indices = @transform_8, window_bounds = array<i64: 1, 32>}, {pipeline_mode = #tpu.pipeline_mode<synchronous>, transform_indices = @transform_9, window_bounds = array<i64: 1, 32>}, {transform_indices = @transform_10, window_bounds = array<i64: 8, 32>}]} {
    %c0 = arith.constant 0 : index
    %c0_0 = arith.constant 0 : index
    %c0_1 = arith.constant 0 : index
    %0 = vector.load %arg1[%c0, %c0_0, %c0_1] : memref<8x16x32xf32, #tpu.memory_space<vmem>>, vector<8x16x32xf32>
    %1 = vector.shape_cast %0 : vector<8x16x32xf32> to vector<128x32xf32>
    %cst = arith.constant dense<0.000000e+00> : vector<128xf32>
    %2 = vector.multi_reduction <add>, %1, %cst [1] : vector<128x32xf32> to vector<128xf32>
    %3 = vector.shape_cast %2 : vector<128xf32> to vector<128x1xf32>
    %cst_2 = arith.constant 3.200000e+01 : f32
    %4 = vector.broadcast %cst_2 : f32 to vector<128x1xf32>
    %5 = arith.divf %3, %4 : vector<128x1xf32>
    %6 = vector.broadcast %5 : vector<128x1xf32> to vector<128x32xf32>
    %7 = arith.subf %1, %6 : vector<128x32xf32>
    %8 = arith.mulf %7, %7 : vector<128x32xf32>
    %cst_3 = arith.constant dense<0.000000e+00> : vector<128xf32>
    %9 = vector.multi_reduction <add>, %8, %cst_3 [1] : vector<128x32xf32> to vector<128xf32>
    %10 = vector.shape_cast %9 : vector<128xf32> to vector<128x1xf32>
    %cst_4 = arith.constant 3.200000e+01 : f32
    %11 = vector.broadcast %cst_4 : f32 to vector<128x1xf32>
    %12 = arith.divf %10, %11 : vector<128x1xf32>
    %13 = vector.broadcast %5 : vector<128x1xf32> to vector<128x32xf32>
    %14 = arith.subf %1, %13 : vector<128x32xf32>
    %cst_5 = arith.constant 9.99999974E-6 : f32
    %15 = vector.broadcast %cst_5 : f32 to vector<128x1xf32>
    %16 = arith.addf %12, %15 : vector<128x1xf32>
    %17 = math.rsqrt %16 : vector<128x1xf32>
    %18 = vector.broadcast %17 : vector<128x1xf32> to vector<128x32xf32>
    %19 = arith.mulf %14, %18 : vector<128x32xf32>
    %c0_6 = arith.constant 0 : index
    %c0_7 = arith.constant 0 : index
    %20 = vector.load %arg2[%c0_6, %c0_7] : memref<1x32xf32, #tpu.memory_space<vmem>>, vector<1x32xf32>
    %21 = vector.broadcast %20 : vector<1x32xf32> to vector<128x32xf32>
    %22 = arith.mulf %19, %21 : vector<128x32xf32>
    %c0_8 = arith.constant 0 : index
    %c0_9 = arith.constant 0 : index
    %23 = vector.load %arg3[%c0_8, %c0_9] : memref<1x32xf32, #tpu.memory_space<vmem>>, vector<1x32xf32>
    %24 = vector.broadcast %23 : vector<1x32xf32> to vector<128x32xf32>
    %25 = arith.addf %22, %24 : vector<128x32xf32>
    %c0_10 = arith.constant 0 : index
    %c0_11 = arith.constant 0 : index
    %26 = vector.load %arg4[%c0_10, %c0_11] : memref<32x32xf32, #tpu.memory_space<vmem>>, vector<32x32xf32>
    %cst_12 = arith.constant dense<0.000000e+00> : vector<128x32xf32>
    %27 = tpu.matmul %25, %26, %cst_12 {dimension_numbers = #tpu.dot_dimension_numbers<[1], [0], [0], [1], [0, 0, 1, 1], [], []>} : vector<128x32xf32>, vector<32x32xf32>, vector<128x32xf32> -> vector<128x32xf32>
    %c0_13 = arith.constant 0 : index
    %c0_14 = arith.constant 0 : index
    %28 = vector.load %arg5[%c0_13, %c0_14] : memref<1x32xf32, #tpu.memory_space<vmem>>, vector<1x32xf32>
    %29 = vector.broadcast %28 : vector<1x32xf32> to vector<128x32xf32>
    %30 = arith.addf %27, %29 : vector<128x32xf32>
    %cst_15 = arith.constant dense<0.000000e+00> : vector<128xf32>
    %31 = vector.multi_reduction <add>, %30, %cst_15 [1] : vector<128x32xf32> to vector<128xf32>
    %32 = vector.shape_cast %31 : vector<128xf32> to vector<128x1xf32>
    %cst_16 = arith.constant 3.200000e+01 : f32
    %33 = vector.broadcast %cst_16 : f32 to vector<128x1xf32>
    %34 = arith.divf %32, %33 : vector<128x1xf32>
    %35 = vector.broadcast %34 : vector<128x1xf32> to vector<128x32xf32>
    %36 = arith.subf %30, %35 : vector<128x32xf32>
    %37 = arith.mulf %36, %36 : vector<128x32xf32>
    %cst_17 = arith.constant dense<0.000000e+00> : vector<128xf32>
    %38 = vector.multi_reduction <add>, %37, %cst_17 [1] : vector<128x32xf32> to vector<128xf32>
    %39 = vector.shape_cast %38 : vector<128xf32> to vector<128x1xf32>
    %cst_18 = arith.constant 3.200000e+01 : f32
    %40 = vector.broadcast %cst_18 : f32 to vector<128x1xf32>
    %41 = arith.divf %39, %40 : vector<128x1xf32>
    %42 = vector.broadcast %34 : vector<128x1xf32> to vector<128x32xf32>
    %43 = arith.subf %30, %42 : vector<128x32xf32>
    %cst_19 = arith.constant 9.99999974E-6 : f32
    %44 = vector.broadcast %cst_19 : f32 to vector<128x1xf32>
    %45 = arith.addf %41, %44 : vector<128x1xf32>
    %46 = math.rsqrt %45 : vector<128x1xf32>
    %47 = vector.broadcast %46 : vector<128x1xf32> to vector<128x32xf32>
    %48 = arith.mulf %43, %47 : vector<128x32xf32>
    %c0_20 = arith.constant 0 : index
    %c0_21 = arith.constant 0 : index
    %49 = vector.load %arg6[%c0_20, %c0_21] : memref<1x32xf32, #tpu.memory_space<vmem>>, vector<1x32xf32>
    %50 = vector.broadcast %49 : vector<1x32xf32> to vector<128x32xf32>
    %51 = arith.mulf %48, %50 : vector<128x32xf32>
    %c0_22 = arith.constant 0 : index
    %c0_23 = arith.constant 0 : index
    %52 = vector.load %arg7[%c0_22, %c0_23] : memref<1x32xf32, #tpu.memory_space<vmem>>, vector<1x32xf32>
    %53 = vector.broadcast %52 : vector<1x32xf32> to vector<128x32xf32>
    %54 = arith.addf %51, %53 : vector<128x32xf32>
    %c0_24 = arith.constant 0 : index
    %c0_25 = arith.constant 0 : index
    %55 = vector.load %arg8[%c0_24, %c0_25] : memref<32x32xf32, #tpu.memory_space<vmem>>, vector<32x32xf32>
    %cst_26 = arith.constant dense<0.000000e+00> : vector<128x32xf32>
    %56 = tpu.matmul %54, %55, %cst_26 {dimension_numbers = #tpu.dot_dimension_numbers<[1], [0], [0], [1], [0, 0, 1, 1], [], []>} : vector<128x32xf32>, vector<32x32xf32>, vector<128x32xf32> -> vector<128x32xf32>
    %c0_27 = arith.constant 0 : index
    %c0_28 = arith.constant 0 : index
    %57 = vector.load %arg9[%c0_27, %c0_28] : memref<1x32xf32, #tpu.memory_space<vmem>>, vector<1x32xf32>
    %58 = vector.broadcast %57 : vector<1x32xf32> to vector<128x32xf32>
    %59 = arith.addf %56, %58 : vector<128x32xf32>
    %60 = math.tanh %59 : vector<128x32xf32>
    %c0_29 = arith.constant 0 : index
    %c0_30 = arith.constant 0 : index
    %61 = vector.load %arg10[%c0_29, %c0_30] : memref<1x32xf32, #tpu.memory_space<vmem>>, vector<1x32xf32>
    %62 = vector.broadcast %61 : vector<1x32xf32> to vector<128x32xf32>
    %63 = arith.mulf %60, %62 : vector<128x32xf32>
    %cst_31 = arith.constant dense<0.000000e+00> : vector<128xf32>
    %64 = vector.multi_reduction <add>, %63, %cst_31 [1] : vector<128x32xf32> to vector<128xf32>
    %65 = vector.shape_cast %64 : vector<128xf32> to vector<128x1xf32>
    %66 = vector.shape_cast %65 : vector<128x1xf32> to vector<8x16x1xf32>
    %cst_32 = arith.constant dense<0xFF800000> : vector<8x1xf32>
    %67 = vector.multi_reduction <maximumf>, %66, %cst_32 [1] : vector<8x16x1xf32> to vector<8x1xf32>
    %68 = vector.shape_cast %67 : vector<8x1xf32> to vector<8x1x1xf32>
    %69 = vector.broadcast %68 : vector<8x1x1xf32> to vector<8x16x1xf32>
    %70 = arith.subf %66, %69 : vector<8x16x1xf32>
    %71 = math.exp %70 : vector<8x16x1xf32>
    %cst_33 = arith.constant dense<0.000000e+00> : vector<8x1xf32>
    %72 = vector.multi_reduction <add>, %71, %cst_33 [1] : vector<8x16x1xf32> to vector<8x1xf32>
    %73 = vector.shape_cast %72 : vector<8x1xf32> to vector<8x1x1xf32>
    %74 = tpu.reciprocal %73 {approx = true} : vector<8x1x1xf32> -> vector<8x1x1xf32>
    %75 = vector.broadcast %74 : vector<8x1x1xf32> to vector<8x16x1xf32>
    %76 = arith.mulf %71, %75 : vector<8x16x1xf32>
    %77 = vector.shape_cast %54 : vector<128x32xf32> to vector<8x16x32xf32>
    %78 = vector.broadcast %76 : vector<8x16x1xf32> to vector<8x16x32xf32>
    %79 = arith.mulf %77, %78 : vector<8x16x32xf32>
    %cst_34 = arith.constant dense<0.000000e+00> : vector<8x32xf32>
    %80 = vector.multi_reduction <add>, %79, %cst_34 [1] : vector<8x16x32xf32> to vector<8x32xf32>
    %c0_35 = arith.constant 0 : index
    %c0_36 = arith.constant 0 : index
    %81 = vector.load %arg11[%c0_35, %c0_36] : memref<8x32xf32, #tpu.memory_space<vmem>>, vector<8x32xf32>
    tpu.vector_store %arg11[%c0_35, %c0_36], %80 {strides = array<i32>} : memref<8x32xf32, #tpu.memory_space<vmem>>, vector<8x32xf32>,
    return
  }
  func.func @transform_0(%arg0: i32) -> (i32, i32, i32) {
    %c0_i32 = arith.constant 0 : i32
    %c0_i32_0 = arith.constant 0 : i32
    %c0_i32_1 = arith.constant 0 : i32
    return %arg0, %c0_i32, %c0_i32_0 : i32, i32, i32
  }
  func.func @transform_1(%arg0: i32) -> (i32, i32) {
    %c0_i32 = arith.constant 0 : i32
    %c0_i32_0 = arith.constant 0 : i32
    %c0_i32_1 = arith.constant 0 : i32
    return %c0_i32, %c0_i32_0 : i32, i32
  }
  func.func @transform_2(%arg0: i32) -> (i32, i32) {
    %c0_i32 = arith.constant 0 : i32
    %c0_i32_0 = arith.constant 0 : i32
    %c0_i32_1 = arith.constant 0 : i32
    return %c0_i32, %c0_i32_0 : i32, i32
  }
  func.func @transform_3(%arg0: i32) -> (i32, i32) {
    %c0_i32 = arith.constant 0 : i32
    %c0_i32_0 = arith.constant 0 : i32
    %c0_i32_1 = arith.constant 0 : i32
    return %c0_i32, %c0_i32_0 : i32, i32
  }
  func.func @transform_4(%arg0: i32) -> (i32, i32) {
    %c0_i32 = arith.constant 0 : i32
    %c0_i32_0 = arith.constant 0 : i32
    %c0_i32_1 = arith.constant 0 : i32
    return %c0_i32, %c0_i32_0 : i32, i32
  }
  func.func @transform_5(%arg0: i32) -> (i32, i32) {
    %c0_i32 = arith.constant 0 : i32
    %c0_i32_0 = arith.constant 0 : i32
    %c0_i32_1 = arith.constant 0 : i32
    return %c0_i32, %c0_i32_0 : i32, i32
  }
  func.func @transform_6(%arg0: i32) -> (i32, i32) {
    %c0_i32 = arith.constant 0 : i32
    %c0_i32_0 = arith.constant 0 : i32
    %c0_i32_1 = arith.constant 0 : i32
    return %c0_i32, %c0_i32_0 : i32, i32
  }
  func.func @transform_7(%arg0: i32) -> (i32, i32) {
    %c0_i32 = arith.constant 0 : i32
    %c0_i32_0 = arith.constant 0 : i32
    %c0_i32_1 = arith.constant 0 : i32
    return %c0_i32, %c0_i32_0 : i32, i32
  }
  func.func @transform_8(%arg0: i32) -> (i32, i32) {
    %c0_i32 = arith.constant 0 : i32
    %c0_i32_0 = arith.constant 0 : i32
    %c0_i32_1 = arith.constant 0 : i32
    return %c0_i32, %c0_i32_0 : i32, i32
  }
  func.func @transform_9(%arg0: i32) -> (i32, i32) {
    %c0_i32 = arith.constant 0 : i32
    %c0_i32_0 = arith.constant 0 : i32
    %c0_i32_1 = arith.constant 0 : i32
    return %c0_i32, %c0_i32_0 : i32, i32
  }
  func.func @transform_10(%arg0: i32) -> (i32, i32) {
    %c0_i32 = arith.constant 0 : i32
    %c0_i32_0 = arith.constant 0 : i32
    return %arg0, %c0_i32 : i32, i32
  }
}

</mosaic_0001>

<llo_original>
// kernel: tpu_custom_call.1
$region0: #{tpu_custom_call.1}
  #allocation0 [shape = 'u32[]', space=smem, size = 0x4, offset = 0x4, fixed_abs, tag = 'smem constant byte address 0x4 - core index']
  #allocation1 [shape = 'u32[144,128]{1,0:T(1,128)}', space=vmem, size = 0x12000, scoped, tag = 'internal scratch']
  %s0 = inlined_call_operand.hbm [shape: f32[16,16,32], index: 0, kind: input, shape index: {}]
  %s1 = inlined_call_operand.vmem [shape: f32[1,32], index: 1, kind: input, shape index: {}]
  %s2 = inlined_call_operand.vmem [shape: f32[1,32], index: 2, kind: input, shape index: {}]
  %s3 = inlined_call_operand.hbm [shape: f32[32,32], index: 3, kind: input, shape index: {}]
  %s4 = inlined_call_operand.vmem [shape: f32[1,32], index: 4, kind: input, shape index: {}]
  %s5 = inlined_call_operand.vmem [shape: f32[1,32], index: 5, kind: input, shape index: {}]
  %s6 = inlined_call_operand.vmem [shape: f32[1,32], index: 6, kind: input, shape index: {}]
  %s7 = inlined_call_operand.hbm [shape: f32[32,32], index: 7, kind: input, shape index: {}]
  %s8 = inlined_call_operand.vmem [shape: f32[1,32], index: 8, kind: input, shape index: {}]
  %s9 = inlined_call_operand.vmem [shape: f32[1,32], index: 9, kind: input, shape index: {}]
  %s10 = inlined_call_operand.hbm [shape: f32[16,32], index: 10, kind: output, shape index: {}]
  %s11 = sld [smem:[#allocation0]]
  $region85: #{tpu_custom_call.1} parent=0
    _
  %s13 = ssub.s32 1, %s11
  %s14 = scalar_select 0, %s13, %s11
  $region1: #{tpu_custom_call.1} parent=0
    #allocation2 [shape = 'u8[131072]{0}', space=vmem, size = 0x20000, scoped, tag = 'input window, operand 0']
    #allocation3 [shape = 's32[2]{0}', space=sflag, size = 0x8, scoped, tag = 'scoped memory for tpu_custom_call.1']
    #allocation4 [shape = 's32[2]{0}', space=sflag, size = 0x8, scoped, tag = 'scoped memory for tpu_custom_call.1']
    #allocation5 [shape = 'u8[16384]{0}', space=vmem, size = 0x4000, scoped, tag = 'input window, operand 3, single buffered']
    #allocation6 [shape = 's32[1]{0}', space=sflag, size = 0x4, scoped, tag = 'scoped memory for tpu_custom_call.1']
    #allocation7 [shape = 'u8[16384]{0}', space=vmem, size = 0x4000, scoped, tag = 'input window, operand 7, single buffered']
    #allocation8 [shape = 'u8[8192]{0}', space=vmem, size = 0x2000, scoped, tag = 'output window, operand 0']
    %15 = vsyncpa [#allocation3], 0
    %s16 = scalar_lea.sflag [#allocation3], 1
    %17 = vsyncpa %s16, 0
    %18 = vsyncpa [#allocation6], 0
    %19 = vsyncpa [#allocation4], 0
    %s20 = scalar_lea.sflag [#allocation4], 1
    %21 = vsyncpa %s20, 0
    loop: start=0, step=1, limit=4
    $region2: #{tpu_custom_call.1} parent=1 // loop_pre_header
      _
    $region3: #{tpu_custom_call.1} parent=1 // loop_header
      %s23 = sphi 0, %s27
      %p24 = scmp.ge.s32.totalorder %s23, 4
      %s33 = sphi 0, %s35
      %s36 = sphi 0, %s33
      %s37 = sphi 0, %s36
      %s53 = sphi 0, %s37
      %s57 = sphi 0, %s57
      %s59 = sphi 0, %s57
      %s60 = sphi 0, %s59
      %s74 = sphi 0, %s60
      %s78 = sphi 0, %s78
      %s80 = sphi 0, %s78
      %s81 = sphi 0, %s80
      %s95 = sphi 0, %s81
      %s99 = sphi 0, %s99
      %s101 = sphi 0, %s99
      %s102 = sphi 0, %s101
      %s116 = sphi 0, %s102
      %s120 = sphi 0, %s120
      %s122 = sphi 0, %s120
      %s123 = sphi 0, %s122
      %s137 = sphi 0, %s123
      %s141 = sphi 0, %s141
      %s143 = sphi 0, %s141
      %s144 = sphi 0, %s143
      %s158 = sphi 0, %s144
      %s162 = sphi 0, %s162
      %s164 = sphi 0, %s162
      %s165 = sphi 0, %s164
      %s179 = sphi 0, %s165
      %s183 = sphi 0, %s183
      %s185 = sphi 0, %s183
      %s186 = sphi 0, %s185
      %s200 = sphi 0, %s186
      %s204 = sphi 0, %s204
      %s206 = sphi 0, %s204
      %s207 = sphi 0, %s206
      %s221 = sphi 0, %s207
      %s225 = sphi 0, %s225
      %s227 = sphi 0, %s225
      %s228 = sphi 0, %s227
      %s242 = sphi 0, %s228
      %s248 = sphi 0, %s250
      %s251 = sphi 0, %s248
      %s252 = sphi 0, %s251
      %s268 = sphi 0, %s252
    $region4: #{tpu_custom_call.1} parent=1 // loop_header_branch
      %26 = sbr.rel (%p24) target = $region8
    $region5: #{tpu_custom_call.1} parent=1 // loop_body
      %s28 = ssub.s32 %s23, 1
      %s29 = ssub.s32 %s23, 2
      %s30 = sadd.s32 %s23, 1
      %s31 = ssub.s32 %s23, %s30
      %p32 = scmp.eq.s32.totalorder %s31, 0
      %s34 = sadd.s32 %s33, 1
      %s35 = scalar_select %p32, %s33, %s34
      %p38 = pneg %p32
      %p39 = scmp.eq.s32.totalorder %s23, 1
      %p40 = por %p38, %p39
      %p41 = scmp.ne.s32.totalorder %s33, %s36
      %p42 = scmp.eq.s32.totalorder %s23, 0
      %p43 = por %p41, %p42
      %p44 = scmp.ne.s32.totalorder %s33, %s36
      %p45 = scmp.eq.s32.totalorder %s28, 1
      %p46 = por %p44, %p45
      %p47 = scmp.ne.s32.totalorder %s36, %s37
      %p48 = scmp.eq.s32.totalorder %s28, 0
      %p49 = por %p47, %p48
      %p50 = scmp.ne.s32.totalorder %s36, %s37
      %p51 = scmp.eq.s32.totalorder %s29, 1
      %p52 = por %p50, %p51
      %p54 = scmp.ne.s32.totalorder %s37, %s53
      %p55 = scmp.eq.s32.totalorder %s29, 0
      %p56 = por %p54, %p55
      %s58 = sadd.s32 %s57, 1
      %p61 = scmp.eq.s32.totalorder %s23, 1
      %p62 = scmp.ne.s32.totalorder %s57, %s59
      %p63 = scmp.eq.s32.totalorder %s23, 0
      %p64 = por %p62, %p63
      %p65 = scmp.ne.s32.totalorder %s57, %s59
      %p66 = scmp.eq.s32.totalorder %s28, 1
      %p67 = por %p65, %p66
      %p68 = scmp.ne.s32.totalorder %s59, %s60
      %p69 = scmp.eq.s32.totalorder %s28, 0
      %p70 = por %p68, %p69
      %p71 = scmp.ne.s32.totalorder %s59, %s60
      %p72 = scmp.eq.s32.totalorder %s29, 1
      %p73 = por %p71, %p72
      %p75 = scmp.ne.s32.totalorder %s60, %s74
      %p76 = scmp.eq.s32.totalorder %s29, 0
      %p77 = por %p75, %p76
      %s79 = sadd.s32 %s78, 1
      %p82 = scmp.eq.s32.totalorder %s23, 1
      %p83 = scmp.ne.s32.totalorder %s78, %s80
      %p84 = scmp.eq.s32.totalorder %s23, 0
      %p85 = por %p83, %p84
      %p86 = scmp.ne.s32.totalorder %s78, %s80
      %p87 = scmp.eq.s32.totalorder %s28, 1
      %p88 = por %p86, %p87
      %p89 = scmp.ne.s32.totalorder %s80, %s81
      %p90 = scmp.eq.s32.totalorder %s28, 0
      %p91 = por %p89, %p90
      %p92 = scmp.ne.s32.totalorder %s80, %s81
      %p93 = scmp.eq.s32.totalorder %s29, 1
      %p94 = por %p92, %p93
      %p96 = scmp.ne.s32.totalorder %s81, %s95
      %p97 = scmp.eq.s32.totalorder %s29, 0
      %p98 = por %p96, %p97
      %s100 = sadd.s32 %s99, 1
      %p103 = scmp.eq.s32.totalorder %s23, 1
      %p104 = scmp.ne.s32.totalorder %s99, %s101
      %p105 = scmp.eq.s32.totalorder %s23, 0
      %p106 = por %p104, %p105
      %p107 = scmp.ne.s32.totalorder %s99, %s101
      %p108 = scmp.eq.s32.totalorder %s28, 1
      %p109 = por %p107, %p108
      %p110 = scmp.ne.s32.totalorder %s101, %s102
      %p111 = scmp.eq.s32.totalorder %s28, 0
      %p112 = por %p110, %p111
      %p113 = scmp.ne.s32.totalorder %s101, %s102
      %p114 = scmp.eq.s32.totalorder %s29, 1
      %p115 = por %p113, %p114
      %p117 = scmp.ne.s32.totalorder %s102, %s116
      %p118 = scmp.eq.s32.totalorder %s29, 0
      %p119 = por %p117, %p118
      %s121 = sadd.s32 %s120, 1
      %p124 = scmp.eq.s32.totalorder %s23, 1
      %p125 = scmp.ne.s32.totalorder %s120, %s122
      %p126 = scmp.eq.s32.totalorder %s23, 0
      %p127 = por %p125, %p126
      %p128 = scmp.ne.s32.totalorder %s120, %s122
      %p129 = scmp.eq.s32.totalorder %s28, 1
      %p130 = por %p128, %p129
      %p131 = scmp.ne.s32.totalorder %s122, %s123
      %p132 = scmp.eq.s32.totalorder %s28, 0
      %p133 = por %p131, %p132
      %p134 = scmp.ne.s32.totalorder %s122, %s123
      %p135 = scmp.eq.s32.totalorder %s29, 1
      %p136 = por %p134, %p135
      %p138 = scmp.ne.s32.totalorder %s123, %s137
      %p139 = scmp.eq.s32.totalorder %s29, 0
      %p140 = por %p138, %p139
      %s142 = sadd.s32 %s141, 1
      %p145 = scmp.eq.s32.totalorder %s23, 1
      %p146 = scmp.ne.s32.totalorder %s141, %s143
      %p147 = scmp.eq.s32.totalorder %s23, 0
      %p148 = por %p146, %p147
      %p149 = scmp.ne.s32.totalorder %s141, %s143
      %p150 = scmp.eq.s32.totalorder %s28, 1
      %p151 = por %p149, %p150
      %p152 = scmp.ne.s32.totalorder %s143, %s144
      %p153 = scmp.eq.s32.totalorder %s28, 0
      %p154 = por %p152, %p153
      %p155 = scmp.ne.s32.totalorder %s143, %s144
      %p156 = scmp.eq.s32.totalorder %s29, 1
      %p157 = por %p155, %p156
      %p159 = scmp.ne.s32.totalorder %s144, %s158
      %p160 = scmp.eq.s32.totalorder %s29, 0
      %p161 = por %p159, %p160
      %s163 = sadd.s32 %s162, 1
      %p166 = scmp.eq.s32.totalorder %s23, 1
      %p167 = scmp.ne.s32.totalorder %s162, %s164
      %p168 = scmp.eq.s32.totalorder %s23, 0
      %p169 = por %p167, %p168
      %p170 = scmp.ne.s32.totalorder %s162, %s164
      %p171 = scmp.eq.s32.totalorder %s28, 1
      %p172 = por %p170, %p171
      %p173 = scmp.ne.s32.totalorder %s164, %s165
      %p174 = scmp.eq.s32.totalorder %s28, 0
      %p175 = por %p173, %p174
      %p176 = scmp.ne.s32.totalorder %s164, %s165
      %p177 = scmp.eq.s32.totalorder %s29, 1
      %p178 = por %p176, %p177
      %p180 = scmp.ne.s32.totalorder %s165, %s179
      %p181 = scmp.eq.s32.totalorder %s29, 0
      %p182 = por %p180, %p181
      %s184 = sadd.s32 %s183, 1
      %p187 = scmp.eq.s32.totalorder %s23, 1
      %p188 = scmp.ne.s32.totalorder %s183, %s185
      %p189 = scmp.eq.s32.totalorder %s23, 0
      %p190 = por %p188, %p189
      %p191 = scmp.ne.s32.totalorder %s183, %s185
      %p192 = scmp.eq.s32.totalorder %s28, 1
      %p193 = por %p191, %p192
      %p194 = scmp.ne.s32.totalorder %s185, %s186
      %p195 = scmp.eq.s32.totalorder %s28, 0
      %p196 = por %p194, %p195
      %p197 = scmp.ne.s32.totalorder %s185, %s186
      %p198 = scmp.eq.s32.totalorder %s29, 1
      %p199 = por %p197, %p198
      %p201 = scmp.ne.s32.totalorder %s186, %s200
      %p202 = scmp.eq.s32.totalorder %s29, 0
      %p203 = por %p201, %p202
      %s205 = sadd.s32 %s204, 1
      %p208 = scmp.eq.s32.totalorder %s23, 1
      %p209 = scmp.ne.s32.totalorder %s204, %s206
      %p210 = scmp.eq.s32.totalorder %s23, 0
      %p211 = por %p209, %p210
      %p212 = scmp.ne.s32.totalorder %s204, %s206
      %p213 = scmp.eq.s32.totalorder %s28, 1
      %p214 = por %p212, %p213
      %p215 = scmp.ne.s32.totalorder %s206, %s207
      %p216 = scmp.eq.s32.totalorder %s28, 0
      %p217 = por %p215, %p216
      %p218 = scmp.ne.s32.totalorder %s206, %s207
      %p219 = scmp.eq.s32.totalorder %s29, 1
      %p220 = por %p218, %p219
      %p222 = scmp.ne.s32.totalorder %s207, %s221
      %p223 = scmp.eq.s32.totalorder %s29, 0
      %p224 = por %p222, %p223
      %s226 = sadd.s32 %s225, 1
      %p229 = scmp.eq.s32.totalorder %s23, 1
      %p230 = scmp.ne.s32.totalorder %s225, %s227
      %p231 = scmp.eq.s32.totalorder %s23, 0
      %p232 = por %p230, %p231
      %p233 = scmp.ne.s32.totalorder %s225, %s227
      %p234 = scmp.eq.s32.totalorder %s28, 1
      %p235 = por %p233, %p234
      %p236 = scmp.ne.s32.totalorder %s227, %s228
      %p237 = scmp.eq.s32.totalorder %s28, 0
      %p238 = por %p236, %p237
      %p239 = scmp.ne.s32.totalorder %s227, %s228
      %p240 = scmp.eq.s32.totalorder %s29, 1
      %p241 = por %p239, %p240
      %p243 = scmp.ne.s32.totalorder %s228, %s242
      %p244 = scmp.eq.s32.totalorder %s29, 0
      %p245 = por %p243, %p244
      %s246 = ssub.s32 %s23, %s30
      %p247 = scmp.eq.s32.totalorder %s246, 0
      %s249 = sadd.s32 %s248, 1
      %s250 = scalar_select %p247, %s248, %s249
      %p253 = pneg %p247
      %p254 = scmp.eq.s32.totalorder %s23, 1
      %p255 = por %p253, %p254
      %p256 = scmp.ne.s32.totalorder %s248, %s251
      %p257 = scmp.eq.s32.totalorder %s23, 0
      %p258 = por %p256, %p257
      %p259 = scmp.ne.s32.totalorder %s248, %s251
      %p260 = scmp.eq.s32.totalorder %s28, 1
      %p261 = por %p259, %p260
      %p262 = scmp.ne.s32.totalorder %s251, %s252
      %p263 = scmp.eq.s32.totalorder %s28, 0
      %p264 = por %p262, %p263
      %p265 = scmp.ne.s32.totalorder %s251, %s252
      %p266 = scmp.eq.s32.totalorder %s29, 1
      %p267 = por %p265, %p266
      %p269 = scmp.ne.s32.totalorder %s252, %s268
      %p270 = scmp.eq.s32.totalorder %s29, 0
      %p271 = por %p269, %p270
      %p272 = scmp.le.s32.totalorder 1, %s23
      %p273 = scmp.lt.s32.totalorder %s23, 3
      %p274 = pnand %p272, %p273
      %p275 = pneg %p274
      // Predicated region
      $region9: #{tpu_custom_call.1} parent=5 // pred_check
        _
      $region10: #{tpu_custom_call.1} parent=5 // pred_check_branch
        %277 = sbr.rel (%p274) target = $region12
      $region11: #{tpu_custom_call.1} parent=5 // pred_region
        %s278 = ssub.s32 %s23, 1
        // Predicated region
        $region13: #{tpu_custom_call.1} parent=11 // pred_check
          %p279 = pneg %p70
        $region14: #{tpu_custom_call.1} parent=11 // pred_check_branch
          %281 = sbr.rel (%p279) target = $region16
        $region15: #{tpu_custom_call.1} parent=11 // pred_region
          _
        $region16: #{tpu_custom_call.1} parent=11 // pred_fallthru
          _
        // Predicated region
        $region17: #{tpu_custom_call.1} parent=11 // pred_check
          %p282 = pneg %p91
        $region18: #{tpu_custom_call.1} parent=11 // pred_check_branch
          %284 = sbr.rel (%p282) target = $region20
        $region19: #{tpu_custom_call.1} parent=11 // pred_region
          _
        $region20: #{tpu_custom_call.1} parent=11 // pred_fallthru
          _
        // Predicated region
        $region21: #{tpu_custom_call.1} parent=11 // pred_check
          %p285 = pneg %p112
        $region22: #{tpu_custom_call.1} parent=11 // pred_check_branch
          %287 = sbr.rel (%p285) target = $region24
        $region23: #{tpu_custom_call.1} parent=11 // pred_region
          %s289 = ssub.s32 512, 512
          %290 = vsyncadd [#allocation6], %s289
          %s291 = sshll.u32 [#allocation5], 4
          %s292 = int_to_ptr.vmem [resolvable:$true] %s291
          %297 = dma.hbm_to_vmem [thread:$0]  %s3, 512, %s292, [#allocation6], 128, 128, 8
        $region24: #{tpu_custom_call.1} parent=11 // pred_fallthru
          _
        // Predicated region
        $region25: #{tpu_custom_call.1} parent=11 // pred_check
          %p298 = pneg %p133
        $region26: #{tpu_custom_call.1} parent=11 // pred_check_branch
          %300 = sbr.rel (%p298) target = $region28
        $region27: #{tpu_custom_call.1} parent=11 // pred_region
          _
        $region28: #{tpu_custom_call.1} parent=11 // pred_fallthru
          _
        // Predicated region
        $region29: #{tpu_custom_call.1} parent=11 // pred_check
          %p301 = pneg %p154
        $region30: #{tpu_custom_call.1} parent=11 // pred_check_branch
          %303 = sbr.rel (%p301) target = $region32
        $region31: #{tpu_custom_call.1} parent=11 // pred_region
          _
        $region32: #{tpu_custom_call.1} parent=11 // pred_fallthru
          _
        // Predicated region
        $region33: #{tpu_custom_call.1} parent=11 // pred_check
          %p304 = pneg %p175
        $region34: #{tpu_custom_call.1} parent=11 // pred_check_branch
          %306 = sbr.rel (%p304) target = $region36
        $region35: #{tpu_custom_call.1} parent=11 // pred_region
          _
        $region36: #{tpu_custom_call.1} parent=11 // pred_fallthru
          _
        // Predicated region
        $region37: #{tpu_custom_call.1} parent=11 // pred_check
          %p307 = pneg %p196
        $region38: #{tpu_custom_call.1} parent=11 // pred_check_branch
          %309 = sbr.rel (%p307) target = $region40
        $region39: #{tpu_custom_call.1} parent=11 // pred_region
          %s311 = ssub.s32 512, 512
          %312 = vsyncadd [#allocation6], %s311
          %s313 = sshll.u32 [#allocation7], 4
          %s314 = int_to_ptr.vmem [resolvable:$true] %s313
          %319 = dma.hbm_to_vmem [thread:$0]  %s7, 512, %s314, [#allocation6], 128, 128, 8
        $region40: #{tpu_custom_call.1} parent=11 // pred_fallthru
          _
        // Predicated region
        $region41: #{tpu_custom_call.1} parent=11 // pred_check
          %p320 = pneg %p217
        $region42: #{tpu_custom_call.1} parent=11 // pred_check_branch
          %322 = sbr.rel (%p320) target = $region44
        $region43: #{tpu_custom_call.1} parent=11 // pred_region
          _
        $region44: #{tpu_custom_call.1} parent=11 // pred_fallthru
          _
        // Predicated region
        $region45: #{tpu_custom_call.1} parent=11 // pred_check
          %p323 = pneg %p238
        $region46: #{tpu_custom_call.1} parent=11 // pred_check_branch
          %325 = sbr.rel (%p323) target = $region48
        $region47: #{tpu_custom_call.1} parent=11 // pred_region
          _
        $region48: #{tpu_custom_call.1} parent=11 // pred_fallthru
          _
      $region12: #{tpu_custom_call.1} parent=5 // pred_fallthru
        _
      %p326 = scmp.lt.s32.totalorder %s23, 2
      // Predicated region
      $region49: #{tpu_custom_call.1} parent=5 // pred_check
        %p327 = pneg %p326
      $region50: #{tpu_custom_call.1} parent=5 // pred_check_branch
        %329 = sbr.rel (%p327) target = $region52
      $region51: #{tpu_custom_call.1} parent=5 // pred_region
        // Predicated region
        $region53: #{tpu_custom_call.1} parent=51 // pred_check
          %p330 = pneg %p43
        $region54: #{tpu_custom_call.1} parent=51 // pred_check_branch
          %332 = sbr.rel (%p330) target = $region56
        $region55: #{tpu_custom_call.1} parent=51 // pred_region
          %s333 = sand.u32 %s33, 1
          %s334 = scalar_lea.sflag [#allocation3], %s333
          %s335 = sand.u32 %s33, 1
          %s336 = smul.addr %s335, 128
          %s337 = scalar_lea.vmem [#allocation2], %s336
          %s338 = smul.u32 8, %s23
          %s340 = ssub.s32 2048, 2048
          %341 = vsyncadd %s334, %s340
          %s342 = smul.addr %s338, 2
          %s343 = smul.addr %s342, 128
          %s344 = scalar_lea.hbm %s0, %s343
          %s345 = sshll.u32 %s337, 4
          %s346 = int_to_ptr.vmem [resolvable:$true] %s345
          %351 = dma.hbm_to_vmem [thread:$0]  %s344, 2048, %s346, %s334, 128, 128, 8
        $region56: #{tpu_custom_call.1} parent=51 // pred_fallthru
          _
      $region52: #{tpu_custom_call.1} parent=5 // pred_fallthru
        _
      %p352 = scmp.le.s32.totalorder 1, %s23
      %p353 = scmp.lt.s32.totalorder %s23, 3
      %p354 = pnand %p352, %p353
      %p355 = pneg %p354
      // Predicated region
      $region57: #{tpu_custom_call.1} parent=5 // pred_check
        _
      $region58: #{tpu_custom_call.1} parent=5 // pred_check_branch
        %357 = sbr.rel (%p354) target = $region60
      $region59: #{tpu_custom_call.1} parent=5 // pred_region
        %s358 = ssub.s32 %s23, 1
        %s359 = sand.u32 %s36, 1
        %s360 = scalar_lea.sflag [#allocation3], %s359
        %s361 = sand.u32 %s36, 1
        %s362 = smul.addr %s361, 128
        %s363 = scalar_lea.vmem [#allocation2], %s362
        // Predicated region
        $region61: #{tpu_custom_call.1} parent=59 // pred_check
          %p364 = pneg %p49
        $region62: #{tpu_custom_call.1} parent=59 // pred_check_branch
          %366 = sbr.rel (%p364) target = $region64
        $region63: #{tpu_custom_call.1} parent=59 // pred_region
          %367 = dma.done %s360, 2048
        $region64: #{tpu_custom_call.1} parent=59 // pred_fallthru
          _
        // Predicated region
        $region65: #{tpu_custom_call.1} parent=59 // pred_check
          %p368 = pneg %p112
        $region66: #{tpu_custom_call.1} parent=59 // pred_check_branch
          %370 = sbr.rel (%p368) target = $region68
        $region67: #{tpu_custom_call.1} parent=59 // pred_region
          %371 = dma.done [#allocation6], 512
        $region68: #{tpu_custom_call.1} parent=59 // pred_fallthru
          _
        // Predicated region
        $region69: #{tpu_custom_call.1} parent=59 // pred_check
          %p372 = pneg %p196
        $region70: #{tpu_custom_call.1} parent=59 // pred_check_branch
          %374 = sbr.rel (%p372) target = $region72
        $region71: #{tpu_custom_call.1} parent=59 // pred_region
          %375 = dma.done [#allocation6], 512
        $region72: #{tpu_custom_call.1} parent=59 // pred_fallthru
          _
        %s376 = sand.u32 %s36, 1
        %s377 = scalar_lea.sflag [#allocation3], %s376
        %s378 = sand.u32 %s36, 1
        %s379 = smul.addr %s378, 128
        %s380 = scalar_lea.vmem [#allocation2], %s379
        %p381 = pneg %p49
        %p382 = pneg %p46
        %p383 = pneg %p70
        %p384 = pneg %p67
        %p385 = pneg %p91
        %p386 = pneg %p88
        %p387 = pneg %p112
        %p388 = pneg %p109
        %p389 = pneg %p133
        %p390 = pneg %p130
        %p391 = pneg %p154
        %p392 = pneg %p151
        %p393 = pneg %p175
        %p394 = pneg %p172
        %p395 = pneg %p196
        %p396 = pneg %p193
        %p397 = pneg %p217
        %p398 = pneg %p214
        %p399 = pneg %p238
        %p400 = pneg %p235
        %p401 = pneg %p264
        %p402 = pneg %p261
        %s403 = sand.u32 %s251, 1
        %s404 = scalar_lea.sflag [#allocation4], %s403
        %s405 = sand.u32 %s251, 1
        %s406 = smul.addr %s405, 8
        %s407 = scalar_lea.vmem [#allocation8], %s406
        %s408 = smul.u32 8, %s28
        %v409 = vld [vmem:[%s363] sm:$0xff]
        %v410 = vld [vmem:[%s363 + $0x8] sm:$0xff]
        %v411 = vld [vmem:[%s363 + $0x10] sm:$0xff]
        %v412 = vld [vmem:[%s363 + $0x18] sm:$0xff]
        %v413 = vld [vmem:[%s363 + $0x20] sm:$0xff]
        %v414 = vld [vmem:[%s363 + $0x28] sm:$0xff]
        %v415 = vld [vmem:[%s363 + $0x30] sm:$0xff]
        %v416 = vld [vmem:[%s363 + $0x38] sm:$0xff]
        %v417 = vld [vmem:[%s363 + $0x40] sm:$0xff]
        %v418 = vld [vmem:[%s363 + $0x48] sm:$0xff]
        %v419 = vld [vmem:[%s363 + $0x50] sm:$0xff]
        %v420 = vld [vmem:[%s363 + $0x58] sm:$0xff]
        %v421 = vld [vmem:[%s363 + $0x60] sm:$0xff]
        %v422 = vld [vmem:[%s363 + $0x68] sm:$0xff]
        %v423 = vld [vmem:[%s363 + $0x70] sm:$0xff]
        %v424 = vld [vmem:[%s363 + $0x78] sm:$0xff]
        %vm425 = vcmask 261120
        %v426 = vsel %vm425, %v409, 0.0
        %427 = vadd.xlane.f32.xlu0 %v426
        %v428 = vpop.xlane.xlu0 %427
        %v429 = vsel %vm425, %v410, 0.0
        %430 = vadd.xlane.f32.xlu0 %v429
        %v431 = vpop.xlane.xlu0 %430
        %v432 = vsel %vm425, %v411, 0.0
        %433 = vadd.xlane.f32.xlu0 %v432
        %v434 = vpop.xlane.xlu0 %433
        %v435 = vsel %vm425, %v412, 0.0
        %436 = vadd.xlane.f32.xlu0 %v435
        %v437 = vpop.xlane.xlu0 %436
        %v438 = vsel %vm425, %v413, 0.0
        %439 = vadd.xlane.f32.xlu0 %v438
        %v440 = vpop.xlane.xlu0 %439
        %v441 = vsel %vm425, %v414, 0.0
        %442 = vadd.xlane.f32.xlu0 %v441
        %v443 = vpop.xlane.xlu0 %442
        %v444 = vsel %vm425, %v415, 0.0
        %445 = vadd.xlane.f32.xlu0 %v444
        %v446 = vpop.xlane.xlu0 %445
        %v447 = vsel %vm425, %v416, 0.0
        %448 = vadd.xlane.f32.xlu0 %v447
        %v449 = vpop.xlane.xlu0 %448
        %v450 = vsel %vm425, %v417, 0.0
        %451 = vadd.xlane.f32.xlu0 %v450
        %v452 = vpop.xlane.xlu0 %451
        %v453 = vsel %vm425, %v418, 0.0
        %454 = vadd.xlane.f32.xlu0 %v453
        %v455 = vpop.xlane.xlu0 %454
        %v456 = vsel %vm425, %v419, 0.0
        %457 = vadd.xlane.f32.xlu0 %v456
        %v458 = vpop.xlane.xlu0 %457
        %v459 = vsel %vm425, %v420, 0.0
        %460 = vadd.xlane.f32.xlu0 %v459
        %v461 = vpop.xlane.xlu0 %460
        %v462 = vsel %vm425, %v421, 0.0
        %463 = vadd.xlane.f32.xlu0 %v462
        %v464 = vpop.xlane.xlu0 %463
        %v465 = vsel %vm425, %v422, 0.0
        %466 = vadd.xlane.f32.xlu0 %v465
        %v467 = vpop.xlane.xlu0 %466
        %v468 = vsel %vm425, %v423, 0.0
        %469 = vadd.xlane.f32.xlu0 %v468
        %v470 = vpop.xlane.xlu0 %469
        %v471 = vsel %vm425, %v424, 0.0
        %472 = vadd.xlane.f32.xlu0 %v471
        %v473 = vpop.xlane.xlu0 %472
        %v474 = vrcp.pop 32.0
        %v475 = vmul.f32 %v428, %v474
        %v476 = vmul.f32 %v431, %v474
        %v477 = vmul.f32 %v434, %v474
        %v478 = vmul.f32 %v437, %v474
        %v479 = vmul.f32 %v440, %v474
        %v480 = vmul.f32 %v443, %v474
        %v481 = vmul.f32 %v446, %v474
        %v482 = vmul.f32 %v449, %v474
        %v483 = vmul.f32 %v452, %v474
        %v484 = vmul.f32 %v455, %v474
        %v485 = vmul.f32 %v458, %v474
        %v486 = vmul.f32 %v461, %v474
        %v487 = vmul.f32 %v464, %v474
        %v488 = vmul.f32 %v467, %v474
        %v489 = vmul.f32 %v470, %v474
        %v490 = vmul.f32 %v473, %v474
        %v491 = vsub.f32 %v409, %v475
        %v492 = vsub.f32 %v410, %v476
        %v493 = vsub.f32 %v411, %v477
        %v494 = vsub.f32 %v412, %v478
        %v495 = vsub.f32 %v413, %v479
        %v496 = vsub.f32 %v414, %v480
        %v497 = vsub.f32 %v415, %v481
        %v498 = vsub.f32 %v416, %v482
        %v499 = vsub.f32 %v417, %v483
        %v500 = vsub.f32 %v418, %v484
        %v501 = vsub.f32 %v419, %v485
        %v502 = vsub.f32 %v420, %v486
        %v503 = vsub.f32 %v421, %v487
        %v504 = vsub.f32 %v422, %v488
        %v505 = vsub.f32 %v423, %v489
        %v506 = vsub.f32 %v424, %v490
        %v507 = vmul.f32 %v491, %v491
        %v508 = vmul.f32 %v492, %v492
        %v509 = vmul.f32 %v493, %v493
        %v510 = vmul.f32 %v494, %v494
        %v511 = vmul.f32 %v495, %v495
        %v512 = vmul.f32 %v496, %v496
        %v513 = vmul.f32 %v497, %v497
        %v514 = vmul.f32 %v498, %v498
        %v515 = vmul.f32 %v499, %v499
        %v516 = vmul.f32 %v500, %v500
        %v517 = vmul.f32 %v501, %v501
        %v518 = vmul.f32 %v502, %v502
        %v519 = vmul.f32 %v503, %v503
        %v520 = vmul.f32 %v504, %v504
        %v521 = vmul.f32 %v505, %v505
        %v522 = vmul.f32 %v506, %v506
        %v523 = vsel %vm425, %v507, 0.0
        %524 = vadd.xlane.f32.xlu0 %v523
        %v525 = vpop.xlane.xlu0 %524
        %v526 = vsel %vm425, %v508, 0.0
        %527 = vadd.xlane.f32.xlu0 %v526
        %v528 = vpop.xlane.xlu0 %527
        %v529 = vsel %vm425, %v509, 0.0
        %530 = vadd.xlane.f32.xlu0 %v529
        %v531 = vpop.xlane.xlu0 %530
        %v532 = vsel %vm425, %v510, 0.0
        %533 = vadd.xlane.f32.xlu0 %v532
        %v534 = vpop.xlane.xlu0 %533
        %v535 = vsel %vm425, %v511, 0.0
        %536 = vadd.xlane.f32.xlu0 %v535
        %v537 = vpop.xlane.xlu0 %536
        %v538 = vsel %vm425, %v512, 0.0
        %539 = vadd.xlane.f32.xlu0 %v538
        %v540 = vpop.xlane.xlu0 %539
        %v541 = vsel %vm425, %v513, 0.0
        %542 = vadd.xlane.f32.xlu0 %v541
        %v543 = vpop.xlane.xlu0 %542
        %v544 = vsel %vm425, %v514, 0.0
        %545 = vadd.xlane.f32.xlu0 %v544
        %v546 = vpop.xlane.xlu0 %545
        %v547 = vsel %vm425, %v515, 0.0
        %548 = vadd.xlane.f32.xlu0 %v547
        %v549 = vpop.xlane.xlu0 %548
        %v550 = vsel %vm425, %v516, 0.0
        %551 = vadd.xlane.f32.xlu0 %v550
        %v552 = vpop.xlane.xlu0 %551
        %v553 = vsel %vm425, %v517, 0.0
        %554 = vadd.xlane.f32.xlu0 %v553
        %v555 = vpop.xlane.xlu0 %554
        %v556 = vsel %vm425, %v518, 0.0
        %557 = vadd.xlane.f32.xlu0 %v556
        %v558 = vpop.xlane.xlu0 %557
        %v559 = vsel %vm425, %v519, 0.0
        %560 = vadd.xlane.f32.xlu0 %v559
        %v561 = vpop.xlane.xlu0 %560
        %v562 = vsel %vm425, %v520, 0.0
        %563 = vadd.xlane.f32.xlu0 %v562
        %v564 = vpop.xlane.xlu0 %563
        %v565 = vsel %vm425, %v521, 0.0
        %566 = vadd.xlane.f32.xlu0 %v565
        %v567 = vpop.xlane.xlu0 %566
        %v568 = vsel %vm425, %v522, 0.0
        %569 = vadd.xlane.f32.xlu0 %v568
        %v570 = vpop.xlane.xlu0 %569
        %v571 = vmul.f32 %v525, %v474
        %v572 = vmul.f32 %v528, %v474
        %v573 = vmul.f32 %v531, %v474
        %v574 = vmul.f32 %v534, %v474
        %v575 = vmul.f32 %v537, %v474
        %v576 = vmul.f32 %v540, %v474
        %v577 = vmul.f32 %v543, %v474
        %v578 = vmul.f32 %v546, %v474
        %v579 = vmul.f32 %v549, %v474
        %v580 = vmul.f32 %v552, %v474
        %v581 = vmul.f32 %v555, %v474
        %v582 = vmul.f32 %v558, %v474
        %v583 = vmul.f32 %v561, %v474
        %v584 = vmul.f32 %v564, %v474
        %v585 = vmul.f32 %v567, %v474
        %v586 = vmul.f32 %v570, %v474
        %v587 = vadd.f32 %v571, 1e-05
        %v588 = vadd.f32 %v572, 1e-05
        %v589 = vadd.f32 %v573, 1e-05
        %v590 = vadd.f32 %v574, 1e-05
        %v591 = vadd.f32 %v575, 1e-05
        %v592 = vadd.f32 %v576, 1e-05
        %v593 = vadd.f32 %v577, 1e-05
        %v594 = vadd.f32 %v578, 1e-05
        %v595 = vadd.f32 %v579, 1e-05
        %v596 = vadd.f32 %v580, 1e-05
        %v597 = vadd.f32 %v581, 1e-05
        %v598 = vadd.f32 %v582, 1e-05
        %v599 = vadd.f32 %v583, 1e-05
        %v600 = vadd.f32 %v584, 1e-05
        %v601 = vadd.f32 %v585, 1e-05
        %v602 = vadd.f32 %v586, 1e-05
        %v603 = vrsqrt.pop %v587
        %v604 = vrsqrt.pop %v588
        %v605 = vrsqrt.pop %v589
        %v606 = vrsqrt.pop %v590
        %v607 = vrsqrt.pop %v591
        %v608 = vrsqrt.pop %v592
        %v609 = vrsqrt.pop %v593
        %v610 = vrsqrt.pop %v594
        %v611 = vrsqrt.pop %v595
        %v612 = vrsqrt.pop %v596
        %v613 = vrsqrt.pop %v597
        %v614 = vrsqrt.pop %v598
        %v615 = vrsqrt.pop %v599
        %v616 = vrsqrt.pop %v600
        %v617 = vrsqrt.pop %v601
        %v618 = vrsqrt.pop %v602
        %v619 = vmul.f32 %v491, %v603
        %v620 = vmul.f32 %v492, %v604
        %v621 = vmul.f32 %v493, %v605
        %v622 = vmul.f32 %v494, %v606
        %v623 = vmul.f32 %v495, %v607
        %v624 = vmul.f32 %v496, %v608
        %v625 = vmul.f32 %v497, %v609
        %v626 = vmul.f32 %v498, %v610
        %v627 = vmul.f32 %v499, %v611
        %v628 = vmul.f32 %v500, %v612
        %v629 = vmul.f32 %v501, %v613
        %v630 = vmul.f32 %v502, %v614
        %v631 = vmul.f32 %v503, %v615
        %v632 = vmul.f32 %v504, %v616
        %v633 = vmul.f32 %v505, %v617
        %v634 = vmul.f32 %v506, %v618
        %v635 = vld [vmem:[%s1] sm:$0x1]
        %v637 = vlaneseq
        %v638 = vshrl.u32 %v637, 7
        %v639 = vsub.s32 0, %v638
        %v640 = vrot.slane %v635, %v639
        %v642 = vmul.f32 %v619, %v640
        %v643 = vmul.f32 %v620, %v640
        %v644 = vmul.f32 %v621, %v640
        %v645 = vmul.f32 %v622, %v640
        %v646 = vmul.f32 %v623, %v640
        %v647 = vmul.f32 %v624, %v640
        %v648 = vmul.f32 %v625, %v640
        %v649 = vmul.f32 %v626, %v640
        %v650 = vmul.f32 %v627, %v640
        %v651 = vmul.f32 %v628, %v640
        %v652 = vmul.f32 %v629, %v640
        %v653 = vmul.f32 %v630, %v640
        %v654 = vmul.f32 %v631, %v640
        %v655 = vmul.f32 %v632, %v640
        %v656 = vmul.f32 %v633, %v640
        %v657 = vmul.f32 %v634, %v640
        %v658 = vld [vmem:[%s2] sm:$0x1]
        %v660 = vlaneseq
        %v661 = vshrl.u32 %v660, 7
        %v662 = vsub.s32 0, %v661
        %v663 = vrot.slane %v658, %v662
        %v665 = vadd.f32 %v642, %v663
        %v666 = vadd.f32 %v643, %v663
        %v667 = vadd.f32 %v644, %v663
        %v668 = vadd.f32 %v645, %v663
        %v669 = vadd.f32 %v646, %v663
        %v670 = vadd.f32 %v647, %v663
        %v671 = vadd.f32 %v648, %v663
        %v672 = vadd.f32 %v649, %v663
        %v673 = vadd.f32 %v650, %v663
        %v674 = vadd.f32 %v651, %v663
        %v675 = vadd.f32 %v652, %v663
        %v676 = vadd.f32 %v653, %v663
        %v677 = vadd.f32 %v654, %v663
        %v678 = vadd.f32 %v655, %v663
        %v679 = vadd.f32 %v656, %v663
        %v680 = vadd.f32 %v657, %v663
        %v681 = vld [vmem:[#allocation5] sm:$0xff]
        %v682 = vld [vmem:[#allocation5 + $0x8] sm:$0xff]
        %v683 = vld [vmem:[#allocation5 + $0x10] sm:$0xff]
        %v684 = vld [vmem:[#allocation5 + $0x18] sm:$0xff]
        %v685 = vld [vmem:[%s4] sm:$0x1]
        %v687 = vlaneseq
        %v688 = vshrl.u32 %v687, 7
        %v689 = vsub.s32 0, %v688
        %v690 = vrot.slane %v685, %v689
        %v693 = vsel %vm425, %v665, 0
        %v696 = vsel %vm425, %v666, 0
        %v699 = vsel %vm425, %v667, 0
        %v702 = vsel %vm425, %v668, 0
        %v705 = vsel %vm425, %v669, 0
        %v708 = vsel %vm425, %v670, 0
        %v711 = vsel %vm425, %v671, 0
        %v714 = vsel %vm425, %v672, 0
        %v717 = vsel %vm425, %v673, 0
        %v720 = vsel %vm425, %v674, 0
        %v723 = vsel %vm425, %v675, 0
        %v726 = vsel %vm425, %v676, 0
        %v729 = vsel %vm425, %v677, 0
        %v732 = vsel %vm425, %v678, 0
        %v735 = vsel %vm425, %v679, 0
        %v738 = vsel %vm425, %v680, 0
        %740 = vmatprep.subr.mxu0 0.0
        %741 = vmatpush1.msra.mxu0 %v681
        %742 = vmatprep.subr.mxu0 0.0
        %743 = vmatpush1.msra.mxu0 %v682
        %744 = vmatprep.subr.mxu0 0.0
        %745 = vmatpush1.msra.mxu0 %v683
        %746 = vmatprep.subr.mxu0 0.0
        %747 = vmatpush1.msra.mxu0 %v684
        %748 = vmatprep.subr.mxu0 0.0
        %749 = vmatpush1.msra.mxu0 0.0
        %750 = vmatprep.subr.mxu0 0.0
        %751 = vmatpush1.msra.mxu0 0.0
        %752 = vmatprep.subr.mxu0 0.0
        %753 = vmatpush1.msra.mxu0 0.0
        %754 = vmatprep.subr.mxu0 0.0
        %755 = vmatpush1.msra.mxu0 0.0
        %756 = vmatprep.subr.mxu0 0.0
        %757 = vmatpush1.msra.mxu0 0.0
        %758 = vmatprep.subr.mxu0 0.0
        %759 = vmatpush1.msra.mxu0 0.0
        %760 = vmatprep.subr.mxu0 0.0
        %761 = vmatpush1.msra.mxu0 0.0
        %762 = vmatprep.subr.mxu0 0.0
        %763 = vmatpush1.msra.mxu0 0.0
        %764 = vmatprep.subr.mxu0 0.0
        %765 = vmatpush1.msra.mxu0 0.0
        %766 = vmatprep.subr.mxu0 0.0
        %767 = vmatpush1.msra.mxu0 0.0
        %768 = vmatprep.subr.mxu0 0.0
        %769 = vmatpush1.msra.mxu0 0.0
        %770 = vmatprep.subr.mxu0 0.0
        %771 = vmatpush1.msra.mxu0 0.0
        %772 = vmatprep.subr.mxu0 0.0
        %773 = vmatpush1.msra.mxu0 0.0
        %774 = vmatprep.subr.mxu0 0.0
        %775 = vmatpush1.msra.mxu0 0.0
        %776 = vmatprep.subr.mxu0 0.0
        %777 = vmatpush1.msra.mxu0 0.0
        %778 = vmatprep.subr.mxu0 0.0
        %779 = vmatpush1.msra.mxu0 0.0
        %780 = vmatprep.subr.mxu0 0.0
        %781 = vmatpush1.msra.mxu0 0.0
        %782 = vmatprep.subr.mxu0 0.0
        %783 = vmatpush1.msra.mxu0 0.0
        %784 = vmatprep.subr.mxu0 0.0
        %785 = vmatpush1.msra.mxu0 0.0
        %786 = vmatprep.subr.mxu0 0.0
        %787 = vmatpush1.msra.mxu0 0.0
        %788 = vmatprep.subr.mxu0 0.0
        %789 = vmatpush1.msra.mxu0 0.0
        %790 = vmatprep.subr.mxu0 0.0
        %791 = vmatpush1.msra.mxu0 0.0
        %792 = vmatprep.subr.mxu0 0.0
        %793 = vmatpush1.msra.mxu0 0.0
        %794 = vmatprep.subr.mxu0 0.0
        %795 = vmatpush1.msra.mxu0 0.0
        %796 = vmatprep.subr.mxu0 0.0
        %797 = vmatpush1.msra.mxu0 0.0
        %798 = vmatprep.subr.mxu0 0.0
        %799 = vmatpush1.msra.mxu0 0.0
        %800 = vmatprep.subr.mxu0 0.0
        %801 = vmatpush1.msra.mxu0 0.0
        %802 = vmatprep.subr.mxu0 0.0
        %803 = vmatpush1.msra.mxu0 0.0
        %804 = vmatprep.mubr.f32.mxu0 0.0
        %805 = vmatmul.mubr.f32.gmra.mrb[0].mxu0 %v693
        %v806 = vpop.f32.mrb[0].mxu0
        %v807 = vadd.f32 %v690, %v806
        %v808 = vpop.f32.mrb[0].mxu0
        %809 = vmatprep.mubr.f32.mxu0 0.0
        %810 = vmatmul.mubr.f32.gmra.mrb[0].mxu0 %v696
        %v811 = vpop.f32.mrb[0].mxu0
        %v812 = vadd.f32 %v690, %v811
        %v813 = vpop.f32.mrb[0].mxu0
        %814 = vmatprep.mubr.f32.mxu0 0.0
        %815 = vmatmul.mubr.f32.gmra.mrb[0].mxu0 %v699
        %v816 = vpop.f32.mrb[0].mxu0
        %v817 = vadd.f32 %v690, %v816
        %v818 = vpop.f32.mrb[0].mxu0
        %819 = vmatprep.mubr.f32.mxu0 0.0
        %820 = vmatmul.mubr.f32.gmra.mrb[0].mxu0 %v702
        %v821 = vpop.f32.mrb[0].mxu0
        %v822 = vadd.f32 %v690, %v821
        %v823 = vpop.f32.mrb[0].mxu0
        %824 = vmatprep.mubr.f32.mxu0 0.0
        %825 = vmatmul.mubr.f32.gmra.mrb[0].mxu0 %v705
        %v826 = vpop.f32.mrb[0].mxu0
        %v827 = vadd.f32 %v690, %v826
        %v828 = vpop.f32.mrb[0].mxu0
        %829 = vmatprep.mubr.f32.mxu0 0.0
        %830 = vmatmul.mubr.f32.gmra.mrb[0].mxu0 %v708
        %v831 = vpop.f32.mrb[0].mxu0
        %v832 = vadd.f32 %v690, %v831
        %v833 = vpop.f32.mrb[0].mxu0
        %834 = vmatprep.mubr.f32.mxu0 0.0
        %835 = vmatmul.mubr.f32.gmra.mrb[0].mxu0 %v711
        %v836 = vpop.f32.mrb[0].mxu0
        %v837 = vadd.f32 %v690, %v836
        %v838 = vpop.f32.mrb[0].mxu0
        %839 = vmatprep.mubr.f32.mxu0 0.0
        %840 = vmatmul.mubr.f32.gmra.mrb[0].mxu0 %v714
        %v841 = vpop.f32.mrb[0].mxu0
        %v842 = vadd.f32 %v690, %v841
        %v843 = vpop.f32.mrb[0].mxu0
        %844 = vmatprep.mubr.f32.mxu0 0.0
        %845 = vmatmul.mubr.f32.gmra.mrb[0].mxu0 %v717
        %v846 = vpop.f32.mrb[0].mxu0
        %v847 = vadd.f32 %v690, %v846
        %v848 = vpop.f32.mrb[0].mxu0
        %849 = vmatprep.mubr.f32.mxu0 0.0
        %850 = vmatmul.mubr.f32.gmra.mrb[0].mxu0 %v720
        %v851 = vpop.f32.mrb[0].mxu0
        %v852 = vadd.f32 %v690, %v851
        %v853 = vpop.f32.mrb[0].mxu0
        %854 = vmatprep.mubr.f32.mxu0 0.0
        %855 = vmatmul.mubr.f32.gmra.mrb[0].mxu0 %v723
        %v856 = vpop.f32.mrb[0].mxu0
        %v857 = vadd.f32 %v690, %v856
        %v858 = vpop.f32.mrb[0].mxu0
        %859 = vmatprep.mubr.f32.mxu0 0.0
        %860 = vmatmul.mubr.f32.gmra.mrb[0].mxu0 %v726
        %v861 = vpop.f32.mrb[0].mxu0
        %v862 = vadd.f32 %v690, %v861
        %v863 = vpop.f32.mrb[0].mxu0
        %864 = vmatprep.mubr.f32.mxu0 0.0
        %865 = vmatmul.mubr.f32.gmra.mrb[0].mxu0 %v729
        %v866 = vpop.f32.mrb[0].mxu0
        %v867 = vadd.f32 %v690, %v866
        %v868 = vpop.f32.mrb[0].mxu0
        %869 = vmatprep.mubr.f32.mxu0 0.0
        %870 = vmatmul.mubr.f32.gmra.mrb[0].mxu0 %v732
        %v871 = vpop.f32.mrb[0].mxu0
        %v872 = vadd.f32 %v690, %v871
        %v873 = vpop.f32.mrb[0].mxu0
        %874 = vmatprep.mubr.f32.mxu0 0.0
        %875 = vmatmul.mubr.f32.gmra.mrb[0].mxu0 %v735
        %v876 = vpop.f32.mrb[0].mxu0
        %v877 = vadd.f32 %v690, %v876
        %v878 = vpop.f32.mrb[0].mxu0
        %879 = vmatprep.mubr.f32.mxu0 0.0
        %880 = vmatmul.mubr.f32.gmra.mrb[0].mxu0 %v738
        %v881 = vpop.f32.mrb[0].mxu0
        %v882 = vadd.f32 %v690, %v881
        %v883 = vpop.f32.mrb[0].mxu0
        %884 = vdwg.mxu0
        %v885 = vsel %vm425, %v807, 0.0
        %886 = vadd.xlane.f32.xlu0 %v885
        %v887 = vpop.xlane.xlu0 %886
        %v888 = vsel %vm425, %v812, 0.0
        %889 = vadd.xlane.f32.xlu0 %v888
        %v890 = vpop.xlane.xlu0 %889
        %v891 = vsel %vm425, %v817, 0.0
        %892 = vadd.xlane.f32.xlu0 %v891
        %v893 = vpop.xlane.xlu0 %892
        %v894 = vsel %vm425, %v822, 0.0
        %895 = vadd.xlane.f32.xlu0 %v894
        %v896 = vpop.xlane.xlu0 %895
        %v897 = vsel %vm425, %v827, 0.0
        %898 = vadd.xlane.f32.xlu0 %v897
        %v899 = vpop.xlane.xlu0 %898
        %v900 = vsel %vm425, %v832, 0.0
        %901 = vadd.xlane.f32.xlu0 %v900
        %v902 = vpop.xlane.xlu0 %901
        %v903 = vsel %vm425, %v837, 0.0
        %904 = vadd.xlane.f32.xlu0 %v903
        %v905 = vpop.xlane.xlu0 %904
        %v906 = vsel %vm425, %v842, 0.0
        %907 = vadd.xlane.f32.xlu0 %v906
        %v908 = vpop.xlane.xlu0 %907
        %v909 = vsel %vm425, %v847, 0.0
        %910 = vadd.xlane.f32.xlu0 %v909
        %v911 = vpop.xlane.xlu0 %910
        %v912 = vsel %vm425, %v852, 0.0
        %913 = vadd.xlane.f32.xlu0 %v912
        %v914 = vpop.xlane.xlu0 %913
        %v915 = vsel %vm425, %v857, 0.0
        %916 = vadd.xlane.f32.xlu0 %v915
        %v917 = vpop.xlane.xlu0 %916
        %v918 = vsel %vm425, %v862, 0.0
        %919 = vadd.xlane.f32.xlu0 %v918
        %v920 = vpop.xlane.xlu0 %919
        %v921 = vsel %vm425, %v867, 0.0
        %922 = vadd.xlane.f32.xlu0 %v921
        %v923 = vpop.xlane.xlu0 %922
        %v924 = vsel %vm425, %v872, 0.0
        %925 = vadd.xlane.f32.xlu0 %v924
        %v926 = vpop.xlane.xlu0 %925
        %v927 = vsel %vm425, %v877, 0.0
        %928 = vadd.xlane.f32.xlu0 %v927
        %v929 = vpop.xlane.xlu0 %928
        %v930 = vsel %vm425, %v882, 0.0
        %931 = vadd.xlane.f32.xlu0 %v930
        %v932 = vpop.xlane.xlu0 %931
        %v933 = vmul.f32 %v887, %v474
        %v934 = vmul.f32 %v890, %v474
        %v935 = vmul.f32 %v893, %v474
        %v936 = vmul.f32 %v896, %v474
        %v937 = vmul.f32 %v899, %v474
        %v938 = vmul.f32 %v902, %v474
        %v939 = vmul.f32 %v905, %v474
        %v940 = vmul.f32 %v908, %v474
        %v941 = vmul.f32 %v911, %v474
        %v942 = vmul.f32 %v914, %v474
        %v943 = vmul.f32 %v917, %v474
        %v944 = vmul.f32 %v920, %v474
        %v945 = vmul.f32 %v923, %v474
        %v946 = vmul.f32 %v926, %v474
        %v947 = vmul.f32 %v929, %v474
        %v948 = vmul.f32 %v932, %v474
        %v949 = vsub.f32 %v807, %v933
        %v950 = vsub.f32 %v812, %v934
        %v951 = vsub.f32 %v817, %v935
        %v952 = vsub.f32 %v822, %v936
        %v953 = vsub.f32 %v827, %v937
        %v954 = vsub.f32 %v832, %v938
        %v955 = vsub.f32 %v837, %v939
        %v956 = vsub.f32 %v842, %v940
        %v957 = vsub.f32 %v847, %v941
        %v958 = vsub.f32 %v852, %v942
        %v959 = vsub.f32 %v857, %v943
        %v960 = vsub.f32 %v862, %v944
        %v961 = vsub.f32 %v867, %v945
        %v962 = vsub.f32 %v872, %v946
        %v963 = vsub.f32 %v877, %v947
        %v964 = vsub.f32 %v882, %v948
        %v965 = vmul.f32 %v949, %v949
        %v966 = vmul.f32 %v950, %v950
        %v967 = vmul.f32 %v951, %v951
        %v968 = vmul.f32 %v952, %v952
        %v969 = vmul.f32 %v953, %v953
        %v970 = vmul.f32 %v954, %v954
        %v971 = vmul.f32 %v955, %v955
        %v972 = vmul.f32 %v956, %v956
        %v973 = vmul.f32 %v957, %v957
        %v974 = vmul.f32 %v958, %v958
        %v975 = vmul.f32 %v959, %v959
        %v976 = vmul.f32 %v960, %v960
        %v977 = vmul.f32 %v961, %v961
        %v978 = vmul.f32 %v962, %v962
        %v979 = vmul.f32 %v963, %v963
        %v980 = vmul.f32 %v964, %v964
        %v981 = vsel %vm425, %v965, 0.0
        %982 = vadd.xlane.f32.xlu0 %v981
        %v983 = vpop.xlane.xlu0 %982
        %v984 = vsel %vm425, %v966, 0.0
        %985 = vadd.xlane.f32.xlu0 %v984
        %v986 = vpop.xlane.xlu0 %985
        %v987 = vsel %vm425, %v967, 0.0
        %988 = vadd.xlane.f32.xlu0 %v987
        %v989 = vpop.xlane.xlu0 %988
        %v990 = vsel %vm425, %v968, 0.0
        %991 = vadd.xlane.f32.xlu0 %v990
        %v992 = vpop.xlane.xlu0 %991
        %v993 = vsel %vm425, %v969, 0.0
        %994 = vadd.xlane.f32.xlu0 %v993
        %v995 = vpop.xlane.xlu0 %994
        %v996 = vsel %vm425, %v970, 0.0
        %997 = vadd.xlane.f32.xlu0 %v996
        %v998 = vpop.xlane.xlu0 %997
        %v999 = vsel %vm425, %v971, 0.0
        %1000 = vadd.xlane.f32.xlu0 %v999
        %v1001 = vpop.xlane.xlu0 %1000
        %v1002 = vsel %vm425, %v972, 0.0
        %1003 = vadd.xlane.f32.xlu0 %v1002
        %v1004 = vpop.xlane.xlu0 %1003
        %v1005 = vsel %vm425, %v973, 0.0
        %1006 = vadd.xlane.f32.xlu0 %v1005
        %v1007 = vpop.xlane.xlu0 %1006
        %v1008 = vsel %vm425, %v974, 0.0
        %1009 = vadd.xlane.f32.xlu0 %v1008
        %v1010 = vpop.xlane.xlu0 %1009
        %v1011 = vsel %vm425, %v975, 0.0
        %1012 = vadd.xlane.f32.xlu0 %v1011
        %v1013 = vpop.xlane.xlu0 %1012
        %v1014 = vsel %vm425, %v976, 0.0
        %1015 = vadd.xlane.f32.xlu0 %v1014
        %v1016 = vpop.xlane.xlu0 %1015
        %v1017 = vsel %vm425, %v977, 0.0
        %1018 = vadd.xlane.f32.xlu0 %v1017
        %v1019 = vpop.xlane.xlu0 %1018
        %v1020 = vsel %vm425, %v978, 0.0
        %1021 = vadd.xlane.f32.xlu0 %v1020
        %v1022 = vpop.xlane.xlu0 %1021
        %v1023 = vsel %vm425, %v979, 0.0
        %1024 = vadd.xlane.f32.xlu0 %v1023
        %v1025 = vpop.xlane.xlu0 %1024
        %v1026 = vsel %vm425, %v980, 0.0
        %1027 = vadd.xlane.f32.xlu0 %v1026
        %v1028 = vpop.xlane.xlu0 %1027
        %v1029 = vmul.f32 %v983, %v474
        %v1030 = vmul.f32 %v986, %v474
        %v1031 = vmul.f32 %v989, %v474
        %v1032 = vmul.f32 %v992, %v474
        %v1033 = vmul.f32 %v995, %v474
        %v1034 = vmul.f32 %v998, %v474
        %v1035 = vmul.f32 %v1001, %v474
        %v1036 = vmul.f32 %v1004, %v474
        %v1037 = vmul.f32 %v1007, %v474
        %v1038 = vmul.f32 %v1010, %v474
        %v1039 = vmul.f32 %v1013, %v474
        %v1040 = vmul.f32 %v1016, %v474
        %v1041 = vmul.f32 %v1019, %v474
        %v1042 = vmul.f32 %v1022, %v474
        %v1043 = vmul.f32 %v1025, %v474
        %v1044 = vmul.f32 %v1028, %v474
        %v1045 = vadd.f32 %v1029, 1e-05
        %v1046 = vadd.f32 %v1030, 1e-05
        %v1047 = vadd.f32 %v1031, 1e-05
        %v1048 = vadd.f32 %v1032, 1e-05
        %v1049 = vadd.f32 %v1033, 1e-05
        %v1050 = vadd.f32 %v1034, 1e-05
        %v1051 = vadd.f32 %v1035, 1e-05
        %v1052 = vadd.f32 %v1036, 1e-05
        %v1053 = vadd.f32 %v1037, 1e-05
        %v1054 = vadd.f32 %v1038, 1e-05
        %v1055 = vadd.f32 %v1039, 1e-05
        %v1056 = vadd.f32 %v1040, 1e-05
        %v1057 = vadd.f32 %v1041, 1e-05
        %v1058 = vadd.f32 %v1042, 1e-05
        %v1059 = vadd.f32 %v1043, 1e-05
        %v1060 = vadd.f32 %v1044, 1e-05
        %v1061 = vrsqrt.pop %v1045
        %v1062 = vrsqrt.pop %v1046
        %v1063 = vrsqrt.pop %v1047
        %v1064 = vrsqrt.pop %v1048
        %v1065 = vrsqrt.pop %v1049
        %v1066 = vrsqrt.pop %v1050
        %v1067 = vrsqrt.pop %v1051
        %v1068 = vrsqrt.pop %v1052
        %v1069 = vrsqrt.pop %v1053
        %v1070 = vrsqrt.pop %v1054
        %v1071 = vrsqrt.pop %v1055
        %v1072 = vrsqrt.pop %v1056
        %v1073 = vrsqrt.pop %v1057
        %v1074 = vrsqrt.pop %v1058
        %v1075 = vrsqrt.pop %v1059
        %v1076 = vrsqrt.pop %v1060
        %v1077 = vmul.f32 %v949, %v1061
        %v1078 = vmul.f32 %v950, %v1062
        %v1079 = vmul.f32 %v951, %v1063
        %v1080 = vmul.f32 %v952, %v1064
        %v1081 = vmul.f32 %v953, %v1065
        %v1082 = vmul.f32 %v954, %v1066
        %v1083 = vmul.f32 %v955, %v1067
        %v1084 = vmul.f32 %v956, %v1068
        %v1085 = vmul.f32 %v957, %v1069
        %v1086 = vmul.f32 %v958, %v1070
        %v1087 = vmul.f32 %v959, %v1071
        %v1088 = vmul.f32 %v960, %v1072
        %v1089 = vmul.f32 %v961, %v1073
        %v1090 = vmul.f32 %v962, %v1074
        %v1091 = vmul.f32 %v963, %v1075
        %v1092 = vmul.f32 %v964, %v1076
        %v1093 = vld [vmem:[%s5] sm:$0x1]
        %v1095 = vlaneseq
        %v1096 = vshrl.u32 %v1095, 7
        %v1097 = vsub.s32 0, %v1096
        %v1098 = vrot.slane %v1093, %v1097
        %v1100 = vmul.f32 %v1077, %v1098
        %v1101 = vmul.f32 %v1078, %v1098
        %v1102 = vmul.f32 %v1079, %v1098
        %v1103 = vmul.f32 %v1080, %v1098
        %v1104 = vmul.f32 %v1081, %v1098
        %v1105 = vmul.f32 %v1082, %v1098
        %v1106 = vmul.f32 %v1083, %v1098
        %v1107 = vmul.f32 %v1084, %v1098
        %v1108 = vmul.f32 %v1085, %v1098
        %v1109 = vmul.f32 %v1086, %v1098
        %v1110 = vmul.f32 %v1087, %v1098
        %v1111 = vmul.f32 %v1088, %v1098
        %v1112 = vmul.f32 %v1089, %v1098
        %v1113 = vmul.f32 %v1090, %v1098
        %v1114 = vmul.f32 %v1091, %v1098
        %v1115 = vmul.f32 %v1092, %v1098
        %v1116 = vld [vmem:[%s6] sm:$0x1]
        %v1118 = vlaneseq
        %v1119 = vshrl.u32 %v1118, 7
        %v1120 = vsub.s32 0, %v1119
        %v1121 = vrot.slane %v1116, %v1120
        %v1123 = vadd.f32 %v1100, %v1121
        %v1124 = vadd.f32 %v1101, %v1121
        %v1125 = vadd.f32 %v1102, %v1121
        %v1126 = vadd.f32 %v1103, %v1121
        %v1127 = vadd.f32 %v1104, %v1121
        %v1128 = vadd.f32 %v1105, %v1121
        %v1129 = vadd.f32 %v1106, %v1121
        %v1130 = vadd.f32 %v1107, %v1121
        %v1131 = vadd.f32 %v1108, %v1121
        %v1132 = vadd.f32 %v1109, %v1121
        %v1133 = vadd.f32 %v1110, %v1121
        %v1134 = vadd.f32 %v1111, %v1121
        %v1135 = vadd.f32 %v1112, %v1121
        %v1136 = vadd.f32 %v1113, %v1121
        %v1137 = vadd.f32 %v1114, %v1121
        %v1138 = vadd.f32 %v1115, %v1121
        %v1139 = vld [vmem:[#allocation7] sm:$0xff]
        %v1140 = vld [vmem:[#allocation7 + $0x8] sm:$0xff]
        %v1141 = vld [vmem:[#allocation7 + $0x10] sm:$0xff]
        %v1142 = vld [vmem:[#allocation7 + $0x18] sm:$0xff]
        %v1143 = vld [vmem:[%s8] sm:$0x1]
        %v1145 = vlaneseq
        %v1146 = vshrl.u32 %v1145, 7
        %v1147 = vsub.s32 0, %v1146
        %v1148 = vrot.slane %v1143, %v1147
        %v1151 = vsel %vm425, %v1123, 0
        %v1154 = vsel %vm425, %v1124, 0
        %v1157 = vsel %vm425, %v1125, 0
        %v1160 = vsel %vm425, %v1126, 0
        %v1163 = vsel %vm425, %v1127, 0
        %v1166 = vsel %vm425, %v1128, 0
        %v1169 = vsel %vm425, %v1129, 0
        %v1172 = vsel %vm425, %v1130, 0
        %v1175 = vsel %vm425, %v1131, 0
        %v1178 = vsel %vm425, %v1132, 0
        %v1181 = vsel %vm425, %v1133, 0
        %v1184 = vsel %vm425, %v1134, 0
        %v1187 = vsel %vm425, %v1135, 0
        %v1190 = vsel %vm425, %v1136, 0
        %v1193 = vsel %vm425, %v1137, 0
        %v1196 = vsel %vm425, %v1138, 0
        %1198 = vmatprep.subr.mxu0 0.0
        %1199 = vmatpush1.msra.mxu0 %v1139
        %1200 = vmatprep.subr.mxu0 0.0
        %1201 = vmatpush1.msra.mxu0 %v1140
        %1202 = vmatprep.subr.mxu0 0.0
        %1203 = vmatpush1.msra.mxu0 %v1141
        %1204 = vmatprep.subr.mxu0 0.0
        %1205 = vmatpush1.msra.mxu0 %v1142
        %1206 = vmatprep.subr.mxu0 0.0
        %1207 = vmatpush1.msra.mxu0 0.0
        %1208 = vmatprep.subr.mxu0 0.0
        %1209 = vmatpush1.msra.mxu0 0.0
        %1210 = vmatprep.subr.mxu0 0.0
        %1211 = vmatpush1.msra.mxu0 0.0
        %1212 = vmatprep.subr.mxu0 0.0
        %1213 = vmatpush1.msra.mxu0 0.0
        %1214 = vmatprep.subr.mxu0 0.0
        %1215 = vmatpush1.msra.mxu0 0.0
        %1216 = vmatprep.subr.mxu0 0.0
        %1217 = vmatpush1.msra.mxu0 0.0
        %1218 = vmatprep.subr.mxu0 0.0
        %1219 = vmatpush1.msra.mxu0 0.0
        %1220 = vmatprep.subr.mxu0 0.0
        %1221 = vmatpush1.msra.mxu0 0.0
        %1222 = vmatprep.subr.mxu0 0.0
        %1223 = vmatpush1.msra.mxu0 0.0
        %1224 = vmatprep.subr.mxu0 0.0
        %1225 = vmatpush1.msra.mxu0 0.0
        %1226 = vmatprep.subr.mxu0 0.0
        %1227 = vmatpush1.msra.mxu0 0.0
        %1228 = vmatprep.subr.mxu0 0.0
        %1229 = vmatpush1.msra.mxu0 0.0
        %1230 = vmatprep.subr.mxu0 0.0
        %1231 = vmatpush1.msra.mxu0 0.0
        %1232 = vmatprep.subr.mxu0 0.0
        %1233 = vmatpush1.msra.mxu0 0.0
        %1234 = vmatprep.subr.mxu0 0.0
        %1235 = vmatpush1.msra.mxu0 0.0
        %1236 = vmatprep.subr.mxu0 0.0
        %1237 = vmatpush1.msra.mxu0 0.0
        %1238 = vmatprep.subr.mxu0 0.0
        %1239 = vmatpush1.msra.mxu0 0.0
        %1240 = vmatprep.subr.mxu0 0.0
        %1241 = vmatpush1.msra.mxu0 0.0
        %1242 = vmatprep.subr.mxu0 0.0
        %1243 = vmatpush1.msra.mxu0 0.0
        %1244 = vmatprep.subr.mxu0 0.0
        %1245 = vmatpush1.msra.mxu0 0.0
        %1246 = vmatprep.subr.mxu0 0.0
        %1247 = vmatpush1.msra.mxu0 0.0
        %1248 = vmatprep.subr.mxu0 0.0
        %1249 = vmatpush1.msra.mxu0 0.0
        %1250 = vmatprep.subr.mxu0 0.0
        %1251 = vmatpush1.msra.mxu0 0.0
        %1252 = vmatprep.subr.mxu0 0.0
        %1253 = vmatpush1.msra.mxu0 0.0
        %1254 = vmatprep.subr.mxu0 0.0
        %1255 = vmatpush1.msra.mxu0 0.0
        %1256 = vmatprep.subr.mxu0 0.0
        %1257 = vmatpush1.msra.mxu0 0.0
        %1258 = vmatprep.subr.mxu0 0.0
        %1259 = vmatpush1.msra.mxu0 0.0
        %1260 = vmatprep.subr.mxu0 0.0
        %1261 = vmatpush1.msra.mxu0 0.0
        %1262 = vmatprep.mubr.f32.mxu0 0.0
        %1263 = vmatmul.mubr.f32.gmra.mrb[0].mxu0 %v1151
        %v1264 = vpop.f32.mrb[0].mxu0
        %v1265 = vadd.f32 %v1148, %v1264
        %v1266 = vpop.f32.mrb[0].mxu0
        %1267 = vmatprep.mubr.f32.mxu0 0.0
        %1268 = vmatmul.mubr.f32.gmra.mrb[0].mxu0 %v1154
        %v1269 = vpop.f32.mrb[0].mxu0
        %v1270 = vadd.f32 %v1148, %v1269
        %v1271 = vpop.f32.mrb[0].mxu0
        %1272 = vmatprep.mubr.f32.mxu0 0.0
        %1273 = vmatmul.mubr.f32.gmra.mrb[0].mxu0 %v1157
        %v1274 = vpop.f32.mrb[0].mxu0
        %v1275 = vadd.f32 %v1148, %v1274
        %v1276 = vpop.f32.mrb[0].mxu0
        %1277 = vmatprep.mubr.f32.mxu0 0.0
        %1278 = vmatmul.mubr.f32.gmra.mrb[0].mxu0 %v1160
        %v1279 = vpop.f32.mrb[0].mxu0
        %v1280 = vadd.f32 %v1148, %v1279
        %v1281 = vpop.f32.mrb[0].mxu0
        %1282 = vmatprep.mubr.f32.mxu0 0.0
        %1283 = vmatmul.mubr.f32.gmra.mrb[0].mxu0 %v1163
        %v1284 = vpop.f32.mrb[0].mxu0
        %v1285 = vadd.f32 %v1148, %v1284
        %v1286 = vpop.f32.mrb[0].mxu0
        %1287 = vmatprep.mubr.f32.mxu0 0.0
        %1288 = vmatmul.mubr.f32.gmra.mrb[0].mxu0 %v1166
        %v1289 = vpop.f32.mrb[0].mxu0
        %v1290 = vadd.f32 %v1148, %v1289
        %v1291 = vpop.f32.mrb[0].mxu0
        %1292 = vmatprep.mubr.f32.mxu0 0.0
        %1293 = vmatmul.mubr.f32.gmra.mrb[0].mxu0 %v1169
        %v1294 = vpop.f32.mrb[0].mxu0
        %v1295 = vadd.f32 %v1148, %v1294
        %v1296 = vpop.f32.mrb[0].mxu0
        %1297 = vmatprep.mubr.f32.mxu0 0.0
        %1298 = vmatmul.mubr.f32.gmra.mrb[0].mxu0 %v1172
        %v1299 = vpop.f32.mrb[0].mxu0
        %v1300 = vadd.f32 %v1148, %v1299
        %v1301 = vpop.f32.mrb[0].mxu0
        %1302 = vmatprep.mubr.f32.mxu0 0.0
        %1303 = vmatmul.mubr.f32.gmra.mrb[0].mxu0 %v1175
        %v1304 = vpop.f32.mrb[0].mxu0
        %v1305 = vadd.f32 %v1148, %v1304
        %v1306 = vpop.f32.mrb[0].mxu0
        %1307 = vmatprep.mubr.f32.mxu0 0.0
        %1308 = vmatmul.mubr.f32.gmra.mrb[0].mxu0 %v1178
        %v1309 = vpop.f32.mrb[0].mxu0
        %v1310 = vadd.f32 %v1148, %v1309
        %v1311 = vpop.f32.mrb[0].mxu0
        %1312 = vmatprep.mubr.f32.mxu0 0.0
        %1313 = vmatmul.mubr.f32.gmra.mrb[0].mxu0 %v1181
        %v1314 = vpop.f32.mrb[0].mxu0
        %v1315 = vadd.f32 %v1148, %v1314
        %v1316 = vpop.f32.mrb[0].mxu0
        %1317 = vmatprep.mubr.f32.mxu0 0.0
        %1318 = vmatmul.mubr.f32.gmra.mrb[0].mxu0 %v1184
        %v1319 = vpop.f32.mrb[0].mxu0
        %v1320 = vadd.f32 %v1148, %v1319
        %v1321 = vpop.f32.mrb[0].mxu0
        %1322 = vmatprep.mubr.f32.mxu0 0.0
        %1323 = vmatmul.mubr.f32.gmra.mrb[0].mxu0 %v1187
        %v1324 = vpop.f32.mrb[0].mxu0
        %v1325 = vadd.f32 %v1148, %v1324
        %v1326 = vpop.f32.mrb[0].mxu0
        %1327 = vmatprep.mubr.f32.mxu0 0.0
        %1328 = vmatmul.mubr.f32.gmra.mrb[0].mxu0 %v1190
        %v1329 = vpop.f32.mrb[0].mxu0
        %v1330 = vadd.f32 %v1148, %v1329
        %v1331 = vpop.f32.mrb[0].mxu0
        %1332 = vmatprep.mubr.f32.mxu0 0.0
        %1333 = vmatmul.mubr.f32.gmra.mrb[0].mxu0 %v1193
        %v1334 = vpop.f32.mrb[0].mxu0
        %v1335 = vadd.f32 %v1148, %v1334
        %v1336 = vpop.f32.mrb[0].mxu0
        %1337 = vmatprep.mubr.f32.mxu0 0.0
        %1338 = vmatmul.mubr.f32.gmra.mrb[0].mxu0 %v1196
        %v1339 = vpop.f32.mrb[0].mxu0
        %v1340 = vadd.f32 %v1148, %v1339
        %v1341 = vpop.f32.mrb[0].mxu0
        %1342 = vdwg.mxu0
        %v1343 = vtanh.pop %v1265
        %v1344 = vtanh.pop %v1270
        %v1345 = vtanh.pop %v1275
        %v1346 = vtanh.pop %v1280
        %v1347 = vtanh.pop %v1285
        %v1348 = vtanh.pop %v1290
        %v1349 = vtanh.pop %v1295
        %v1350 = vtanh.pop %v1300
        %v1351 = vtanh.pop %v1305
        %v1352 = vtanh.pop %v1310
        %v1353 = vtanh.pop %v1315
        %v1354 = vtanh.pop %v1320
        %v1355 = vtanh.pop %v1325
        %v1356 = vtanh.pop %v1330
        %v1357 = vtanh.pop %v1335
        %v1358 = vtanh.pop %v1340
        %v1359 = vld [vmem:[%s9] sm:$0x1]
        %v1361 = vlaneseq
        %v1362 = vshrl.u32 %v1361, 7
        %v1363 = vsub.s32 0, %v1362
        %v1364 = vrot.slane %v1359, %v1363
        %v1366 = vmul.f32 %v1343, %v1364
        %v1367 = vmul.f32 %v1344, %v1364
        %v1368 = vmul.f32 %v1345, %v1364
        %v1369 = vmul.f32 %v1346, %v1364
        %v1370 = vmul.f32 %v1347, %v1364
        %v1371 = vmul.f32 %v1348, %v1364
        %v1372 = vmul.f32 %v1349, %v1364
        %v1373 = vmul.f32 %v1350, %v1364
        %v1374 = vmul.f32 %v1351, %v1364
        %v1375 = vmul.f32 %v1352, %v1364
        %v1376 = vmul.f32 %v1353, %v1364
        %v1377 = vmul.f32 %v1354, %v1364
        %v1378 = vmul.f32 %v1355, %v1364
        %v1379 = vmul.f32 %v1356, %v1364
        %v1380 = vmul.f32 %v1357, %v1364
        %v1381 = vmul.f32 %v1358, %v1364
        %v1382 = vsel %vm425, %v1366, 0.0
        %1383 = vadd.xlane.f32.xlu0 %v1382
        %v1384 = vpop.xlane.xlu0 %1383
        %v1385 = vsel %vm425, %v1367, 0.0
        %1386 = vadd.xlane.f32.xlu0 %v1385
        %v1387 = vpop.xlane.xlu0 %1386
        %v1388 = vsel %vm425, %v1368, 0.0
        %1389 = vadd.xlane.f32.xlu0 %v1388
        %v1390 = vpop.xlane.xlu0 %1389
        %v1391 = vsel %vm425, %v1369, 0.0
        %1392 = vadd.xlane.f32.xlu0 %v1391
        %v1393 = vpop.xlane.xlu0 %1392
        %v1394 = vsel %vm425, %v1370, 0.0
        %1395 = vadd.xlane.f32.xlu0 %v1394
        %v1396 = vpop.xlane.xlu0 %1395
        %v1397 = vsel %vm425, %v1371, 0.0
        %1398 = vadd.xlane.f32.xlu0 %v1397
        %v1399 = vpop.xlane.xlu0 %1398
        %v1400 = vsel %vm425, %v1372, 0.0
        %1401 = vadd.xlane.f32.xlu0 %v1400
        %v1402 = vpop.xlane.xlu0 %1401
        %v1403 = vsel %vm425, %v1373, 0.0
        %1404 = vadd.xlane.f32.xlu0 %v1403
        %v1405 = vpop.xlane.xlu0 %1404
        %v1406 = vsel %vm425, %v1374, 0.0
        %1407 = vadd.xlane.f32.xlu0 %v1406
        %v1408 = vpop.xlane.xlu0 %1407
        %v1409 = vsel %vm425, %v1375, 0.0
        %1410 = vadd.xlane.f32.xlu0 %v1409
        %v1411 = vpop.xlane.xlu0 %1410
        %v1412 = vsel %vm425, %v1376, 0.0
        %1413 = vadd.xlane.f32.xlu0 %v1412
        %v1414 = vpop.xlane.xlu0 %1413
        %v1415 = vsel %vm425, %v1377, 0.0
        %1416 = vadd.xlane.f32.xlu0 %v1415
        %v1417 = vpop.xlane.xlu0 %1416
        %v1418 = vsel %vm425, %v1378, 0.0
        %1419 = vadd.xlane.f32.xlu0 %v1418
        %v1420 = vpop.xlane.xlu0 %1419
        %v1421 = vsel %vm425, %v1379, 0.0
        %1422 = vadd.xlane.f32.xlu0 %v1421
        %v1423 = vpop.xlane.xlu0 %1422
        %v1424 = vsel %vm425, %v1380, 0.0
        %1425 = vadd.xlane.f32.xlu0 %v1424
        %v1426 = vpop.xlane.xlu0 %1425
        %v1427 = vsel %vm425, %v1381, 0.0
        %1428 = vadd.xlane.f32.xlu0 %v1427
        %v1429 = vpop.xlane.xlu0 %1428
        %v1430 = vmax.f32 %v1384, %v1387
        %v1431 = vrot.slane %v1430, 4
        %v1432 = vmax.f32 %v1430, %v1431
        %v1433 = vrot.slane %v1432, 2
        %v1434 = vmax.f32 %v1432, %v1433
        %v1435 = vrot.slane %v1434, 1
        %v1436 = vmax.f32 %v1434, %v1435
        %v1437 = vmax.f32 %v1390, %v1393
        %v1438 = vrot.slane %v1437, 4
        %v1439 = vmax.f32 %v1437, %v1438
        %v1440 = vrot.slane %v1439, 2
        %v1441 = vmax.f32 %v1439, %v1440
        %v1442 = vrot.slane %v1441, 1
        %v1443 = vmax.f32 %v1441, %v1442
        %v1444 = vmax.f32 %v1396, %v1399
        %v1445 = vrot.slane %v1444, 4
        %v1446 = vmax.f32 %v1444, %v1445
        %v1447 = vrot.slane %v1446, 2
        %v1448 = vmax.f32 %v1446, %v1447
        %v1449 = vrot.slane %v1448, 1
        %v1450 = vmax.f32 %v1448, %v1449
        %v1451 = vmax.f32 %v1402, %v1405
        %v1452 = vrot.slane %v1451, 4
        %v1453 = vmax.f32 %v1451, %v1452
        %v1454 = vrot.slane %v1453, 2
        %v1455 = vmax.f32 %v1453, %v1454
        %v1456 = vrot.slane %v1455, 1
        %v1457 = vmax.f32 %v1455, %v1456
        %v1458 = vmax.f32 %v1408, %v1411
        %v1459 = vrot.slane %v1458, 4
        %v1460 = vmax.f32 %v1458, %v1459
        %v1461 = vrot.slane %v1460, 2
        %v1462 = vmax.f32 %v1460, %v1461
        %v1463 = vrot.slane %v1462, 1
        %v1464 = vmax.f32 %v1462, %v1463
        %v1465 = vmax.f32 %v1414, %v1417
        %v1466 = vrot.slane %v1465, 4
        %v1467 = vmax.f32 %v1465, %v1466
        %v1468 = vrot.slane %v1467, 2
        %v1469 = vmax.f32 %v1467, %v1468
        %v1470 = vrot.slane %v1469, 1
        %v1471 = vmax.f32 %v1469, %v1470
        %v1472 = vmax.f32 %v1420, %v1423
        %v1473 = vrot.slane %v1472, 4
        %v1474 = vmax.f32 %v1472, %v1473
        %v1475 = vrot.slane %v1474, 2
        %v1476 = vmax.f32 %v1474, %v1475
        %v1477 = vrot.slane %v1476, 1
        %v1478 = vmax.f32 %v1476, %v1477
        %v1479 = vmax.f32 %v1426, %v1429
        %v1480 = vrot.slane %v1479, 4
        %v1481 = vmax.f32 %v1479, %v1480
        %v1482 = vrot.slane %v1481, 2
        %v1483 = vmax.f32 %v1481, %v1482
        %v1484 = vrot.slane %v1483, 1
        %v1485 = vmax.f32 %v1483, %v1484
        %v1486 = vsub.f32 %v1384, %v1436
        %v1487 = vsub.f32 %v1387, %v1436
        %v1488 = vsub.f32 %v1390, %v1443
        %v1489 = vsub.f32 %v1393, %v1443
        %v1490 = vsub.f32 %v1396, %v1450
        %v1491 = vsub.f32 %v1399, %v1450
        %v1492 = vsub.f32 %v1402, %v1457
        %v1493 = vsub.f32 %v1405, %v1457
        %v1494 = vsub.f32 %v1408, %v1464
        %v1495 = vsub.f32 %v1411, %v1464
        %v1496 = vsub.f32 %v1414, %v1471
        %v1497 = vsub.f32 %v1417, %v1471
        %v1498 = vsub.f32 %v1420, %v1478
        %v1499 = vsub.f32 %v1423, %v1478
        %v1500 = vsub.f32 %v1426, %v1485
        %v1501 = vsub.f32 %v1429, %v1485
        %v1502 = vmul.f32 %v1486, 1.442695
        %v1503 = vpow.pop %v1502
        %v1504 = vmul.f32 %v1487, 1.442695
        %v1505 = vpow.pop %v1504
        %v1506 = vmul.f32 %v1488, 1.442695
        %v1507 = vpow.pop %v1506
        %v1508 = vmul.f32 %v1489, 1.442695
        %v1509 = vpow.pop %v1508
        %v1510 = vmul.f32 %v1490, 1.442695
        %v1511 = vpow.pop %v1510
        %v1512 = vmul.f32 %v1491, 1.442695
        %v1513 = vpow.pop %v1512
        %v1514 = vmul.f32 %v1492, 1.442695
        %v1515 = vpow.pop %v1514
        %v1516 = vmul.f32 %v1493, 1.442695
        %v1517 = vpow.pop %v1516
        %v1518 = vmul.f32 %v1494, 1.442695
        %v1519 = vpow.pop %v1518
        %v1520 = vmul.f32 %v1495, 1.442695
        %v1521 = vpow.pop %v1520
        %v1522 = vmul.f32 %v1496, 1.442695
        %v1523 = vpow.pop %v1522
        %v1524 = vmul.f32 %v1497, 1.442695
        %v1525 = vpow.pop %v1524
        %v1526 = vmul.f32 %v1498, 1.442695
        %v1527 = vpow.pop %v1526
        %v1528 = vmul.f32 %v1499, 1.442695
        %v1529 = vpow.pop %v1528
        %v1530 = vmul.f32 %v1500, 1.442695
        %v1531 = vpow.pop %v1530
        %v1532 = vmul.f32 %v1501, 1.442695
        %v1533 = vpow.pop %v1532
        %v1534 = vadd.f32 %v1503, %v1505
        %v1535 = vrot.slane %v1534, 4
        %v1536 = vadd.f32 %v1534, %v1535
        %v1537 = vrot.slane %v1536, 2
        %v1538 = vadd.f32 %v1536, %v1537
        %v1539 = vrot.slane %v1538, 1
        %v1540 = vadd.f32 %v1538, %v1539
        %v1541 = vadd.f32 %v1507, %v1509
        %v1542 = vrot.slane %v1541, 4
        %v1543 = vadd.f32 %v1541, %v1542
        %v1544 = vrot.slane %v1543, 2
        %v1545 = vadd.f32 %v1543, %v1544
        %v1546 = vrot.slane %v1545, 1
        %v1547 = vadd.f32 %v1545, %v1546
        %v1548 = vadd.f32 %v1511, %v1513
        %v1549 = vrot.slane %v1548, 4
        %v1550 = vadd.f32 %v1548, %v1549
        %v1551 = vrot.slane %v1550, 2
        %v1552 = vadd.f32 %v1550, %v1551
        %v1553 = vrot.slane %v1552, 1
        %v1554 = vadd.f32 %v1552, %v1553
        %v1555 = vadd.f32 %v1515, %v1517
        %v1556 = vrot.slane %v1555, 4
        %v1557 = vadd.f32 %v1555, %v1556
        %v1558 = vrot.slane %v1557, 2
        %v1559 = vadd.f32 %v1557, %v1558
        %v1560 = vrot.slane %v1559, 1
        %v1561 = vadd.f32 %v1559, %v1560
        %v1562 = vadd.f32 %v1519, %v1521
        %v1563 = vrot.slane %v1562, 4
        %v1564 = vadd.f32 %v1562, %v1563
        %v1565 = vrot.slane %v1564, 2
        %v1566 = vadd.f32 %v1564, %v1565
        %v1567 = vrot.slane %v1566, 1
        %v1568 = vadd.f32 %v1566, %v1567
        %v1569 = vadd.f32 %v1523, %v1525
        %v1570 = vrot.slane %v1569, 4
        %v1571 = vadd.f32 %v1569, %v1570
        %v1572 = vrot.slane %v1571, 2
        %v1573 = vadd.f32 %v1571, %v1572
        %v1574 = vrot.slane %v1573, 1
        %v1575 = vadd.f32 %v1573, %v1574
        %v1576 = vadd.f32 %v1527, %v1529
        %v1577 = vrot.slane %v1576, 4
        %v1578 = vadd.f32 %v1576, %v1577
        %v1579 = vrot.slane %v1578, 2
        %v1580 = vadd.f32 %v1578, %v1579
        %v1581 = vrot.slane %v1580, 1
        %v1582 = vadd.f32 %v1580, %v1581
        %v1583 = vadd.f32 %v1531, %v1533
        %v1584 = vrot.slane %v1583, 4
        %v1585 = vadd.f32 %v1583, %v1584
        %v1586 = vrot.slane %v1585, 2
        %v1587 = vadd.f32 %v1585, %v1586
        %v1588 = vrot.slane %v1587, 1
        %v1589 = vadd.f32 %v1587, %v1588
        %v1590 = vrcp.pop %v1540
        %v1591 = vrcp.pop %v1547
        %v1592 = vrcp.pop %v1554
        %v1593 = vrcp.pop %v1561
        %v1594 = vrcp.pop %v1568
        %v1595 = vrcp.pop %v1575
        %v1596 = vrcp.pop %v1582
        %v1597 = vrcp.pop %v1589
        %v1598 = vmul.f32 %v1503, %v1590
        %v1599 = vmul.f32 %v1505, %v1590
        %v1600 = vmul.f32 %v1507, %v1591
        %v1601 = vmul.f32 %v1509, %v1591
        %v1602 = vmul.f32 %v1511, %v1592
        %v1603 = vmul.f32 %v1513, %v1592
        %v1604 = vmul.f32 %v1515, %v1593
        %v1605 = vmul.f32 %v1517, %v1593
        %v1606 = vmul.f32 %v1519, %v1594
        %v1607 = vmul.f32 %v1521, %v1594
        %v1608 = vmul.f32 %v1523, %v1595
        %v1609 = vmul.f32 %v1525, %v1595
        %v1610 = vmul.f32 %v1527, %v1596
        %v1611 = vmul.f32 %v1529, %v1596
        %v1612 = vmul.f32 %v1531, %v1597
        %v1613 = vmul.f32 %v1533, %v1597
        %v1614 = vmul.f32 %v1123, %v1598
        %v1615 = vmul.f32 %v1124, %v1599
        %v1616 = vmul.f32 %v1125, %v1600
        %v1617 = vmul.f32 %v1126, %v1601
        %v1618 = vmul.f32 %v1127, %v1602
        %v1619 = vmul.f32 %v1128, %v1603
        %v1620 = vmul.f32 %v1129, %v1604
        %v1621 = vmul.f32 %v1130, %v1605
        %v1622 = vmul.f32 %v1131, %v1606
        %v1623 = vmul.f32 %v1132, %v1607
        %v1624 = vmul.f32 %v1133, %v1608
        %v1625 = vmul.f32 %v1134, %v1609
        %v1626 = vmul.f32 %v1135, %v1610
        %v1627 = vmul.f32 %v1136, %v1611
        %v1628 = vmul.f32 %v1137, %v1612
        %v1629 = vmul.f32 %v1138, %v1613
        %v1630 = vsel %vm425, %v1614, 0.0
        %v1631 = vsel %vm425, %v1615, 0.0
        %v1632 = vadd.f32 %v1630, %v1631
        %v1633 = vrot.slane %v1632, 4
        %v1634 = vadd.f32 %v1632, %v1633
        %v1635 = vrot.slane %v1634, 2
        %v1636 = vadd.f32 %v1634, %v1635
        %v1637 = vrot.slane %v1636, 1
        %v1638 = vadd.f32 %v1636, %v1637
        %v1639 = vsel %vm425, %v1616, 0.0
        %v1640 = vsel %vm425, %v1617, 0.0
        %v1641 = vadd.f32 %v1639, %v1640
        %v1642 = vrot.slane %v1641, 4
        %v1643 = vadd.f32 %v1641, %v1642
        %v1644 = vrot.slane %v1643, 2
        %v1645 = vadd.f32 %v1643, %v1644
        %v1646 = vrot.slane %v1645, 1
        %v1647 = vadd.f32 %v1645, %v1646
        %v1648 = vsel %vm425, %v1618, 0.0
        %v1649 = vsel %vm425, %v1619, 0.0
        %v1650 = vadd.f32 %v1648, %v1649
        %v1651 = vrot.slane %v1650, 4
        %v1652 = vadd.f32 %v1650, %v1651
        %v1653 = vrot.slane %v1652, 2
        %v1654 = vadd.f32 %v1652, %v1653
        %v1655 = vrot.slane %v1654, 1
        %v1656 = vadd.f32 %v1654, %v1655
        %v1657 = vsel %vm425, %v1620, 0.0
        %v1658 = vsel %vm425, %v1621, 0.0
        %v1659 = vadd.f32 %v1657, %v1658
        %v1660 = vrot.slane %v1659, 4
        %v1661 = vadd.f32 %v1659, %v1660
        %v1662 = vrot.slane %v1661, 2
        %v1663 = vadd.f32 %v1661, %v1662
        %v1664 = vrot.slane %v1663, 1
        %v1665 = vadd.f32 %v1663, %v1664
        %v1666 = vsel %vm425, %v1622, 0.0
        %v1667 = vsel %vm425, %v1623, 0.0
        %v1668 = vadd.f32 %v1666, %v1667
        %v1669 = vrot.slane %v1668, 4
        %v1670 = vadd.f32 %v1668, %v1669
        %v1671 = vrot.slane %v1670, 2
        %v1672 = vadd.f32 %v1670, %v1671
        %v1673 = vrot.slane %v1672, 1
        %v1674 = vadd.f32 %v1672, %v1673
        %v1675 = vsel %vm425, %v1624, 0.0
        %v1676 = vsel %vm425, %v1625, 0.0
        %v1677 = vadd.f32 %v1675, %v1676
        %v1678 = vrot.slane %v1677, 4
        %v1679 = vadd.f32 %v1677, %v1678
        %v1680 = vrot.slane %v1679, 2
        %v1681 = vadd.f32 %v1679, %v1680
        %v1682 = vrot.slane %v1681, 1
        %v1683 = vadd.f32 %v1681, %v1682
        %v1684 = vsel %vm425, %v1626, 0.0
        %v1685 = vsel %vm425, %v1627, 0.0
        %v1686 = vadd.f32 %v1684, %v1685
        %v1687 = vrot.slane %v1686, 4
        %v1688 = vadd.f32 %v1686, %v1687
        %v1689 = vrot.slane %v1688, 2
        %v1690 = vadd.f32 %v1688, %v1689
        %v1691 = vrot.slane %v1690, 1
        %v1692 = vadd.f32 %v1690, %v1691
        %v1693 = vsel %vm425, %v1628, 0.0
        %v1694 = vsel %vm425, %v1629, 0.0
        %v1695 = vadd.f32 %v1693, %v1694
        %v1696 = vrot.slane %v1695, 4
        %v1697 = vadd.f32 %v1695, %v1696
        %v1698 = vrot.slane %v1697, 2
        %v1699 = vadd.f32 %v1697, %v1698
        %v1700 = vrot.slane %v1699, 1
        %v1701 = vadd.f32 %v1699, %v1700
        %vm1710 = vcmask 1041409
        %v1711 = vsel %vm1710, %v1647, %v1638
        %vm1712 = vcmask 1042434
        %v1713 = vsel %vm1712, %v1656, %v1711
        %vm1714 = vcmask 1043459
        %v1715 = vsel %vm1714, %v1665, %v1713
        %vm1716 = vcmask 1044484
        %v1717 = vsel %vm1716, %v1674, %v1715
        %vm1718 = vcmask 1045509
        %v1719 = vsel %vm1718, %v1683, %v1717
        %vm1720 = vcmask 1046534
        %v1721 = vsel %vm1720, %v1692, %v1719
        %vm1722 = vcmask 1047559
        %v1723 = vsel %vm1722, %v1701, %v1721
        %1725 = vst.msk [vmem:[%s407] sm:$0xff] %vm425, %v1723
        %s1726 = sand.u32 %s251, 1
        %s1727 = scalar_lea.sflag [#allocation4], %s1726
        %s1728 = sand.u32 %s251, 1
        %s1729 = smul.addr %s1728, 8
        %s1730 = scalar_lea.vmem [#allocation8], %s1729
        // Predicated region
        $region73: #{tpu_custom_call.1} parent=59 // pred_check
          %p1731 = pneg %p261
        $region74: #{tpu_custom_call.1} parent=59 // pred_check_branch
          %1733 = sbr.rel (%p1731) target = $region76
        $region75: #{tpu_custom_call.1} parent=59 // pred_region
          %s1735 = ssub.s32 128, 128
          %1736 = vsyncadd %s1727, %s1735
          %s1737 = smul.addr %s28, 128
          %s1738 = scalar_lea.hbm %s10, %s1737
          %s1740 = sshll.u32 %s1730, 4
          %s1741 = int_to_ptr.vmem [resolvable:$true] %s1740
          %1743 = dma.vmem_to_hbm [thread:$0]  %s1741, 128, %s1738, %s1727
        $region76: #{tpu_custom_call.1} parent=59 // pred_fallthru
          _
      $region60: #{tpu_custom_call.1} parent=5 // pred_fallthru
        _
      %p1744 = scmp.le.s32.totalorder 2, %s23
      // Predicated region
      $region77: #{tpu_custom_call.1} parent=5 // pred_check
        %p1745 = pneg %p1744
      $region78: #{tpu_custom_call.1} parent=5 // pred_check_branch
        %1747 = sbr.rel (%p1745) target = $region80
      $region79: #{tpu_custom_call.1} parent=5 // pred_region
        %s1748 = ssub.s32 %s23, 2
        // Predicated region
        $region81: #{tpu_custom_call.1} parent=79 // pred_check
          %p1749 = pneg %p267
        $region82: #{tpu_custom_call.1} parent=79 // pred_check_branch
          %1751 = sbr.rel (%p1749) target = $region84
        $region83: #{tpu_custom_call.1} parent=79 // pred_region
          %s1752 = sand.u32 %s252, 1
          %s1753 = scalar_lea.sflag [#allocation4], %s1752
          %s1754 = sand.u32 %s252, 1
          %s1755 = smul.addr %s1754, 8
          %s1756 = scalar_lea.vmem [#allocation8], %s1755
          %1757 = dma.done %s1753, 128
        $region84: #{tpu_custom_call.1} parent=79 // pred_fallthru
          _
      $region80: #{tpu_custom_call.1} parent=5 // pred_fallthru
        _
    $region6: #{tpu_custom_call.1} parent=1 // loop_footer
      %s27 = sadd.s32 1, %s23
    $region7: #{tpu_custom_call.1} parent=1 // loop_footer_branch
      %22 = sbr.rel target = $region3
    $region8: #{tpu_custom_call.1} parent=1 // loop_exit
      _
    %1758 = vsyncpa [#allocation3], 1
    %s1759 = scalar_lea.sflag [#allocation3], 1
    %1760 = vsyncpa %s1759, 1
    %1761 = vsyncpa [#allocation6], 1
    %1762 = vsyncpa [#allocation4], 1
    %s1763 = scalar_lea.sflag [#allocation4], 1
    %1764 = vsyncpa %s1763, 1

</llo_original>
